<compile_context>
chip_gen: v7x
topology: tpu7x:2x2x1
jax: 0.10.0
libtpu: 0.0.40
codegen_flags: <defaults>
</compile_context>

<pallas_src>
import jax
import jax.numpy as jnp
from jax.experimental import pallas as pl
from jax.experimental.pallas import tpu as pltpu

EPS = 1e-5          # nn.BatchNorm1d default
NEG_SLOPE = 0.01    # nn.LeakyReLU default
PADW = 128          # every feature dim zero-padded to one full lane tile


def _make_autoencoder_kernel(has_bn, inv_n):
    """has_bn: static tuple[bool] per layer; inv_n: 1/batch (static python float)."""

    def kernel(x_ref, w_ref, v_ref, o_ref):
        h = x_ref[...]                          # (N, PADW) f32, already lane-padded
        for l, bn in enumerate(has_bn):         # statically unrolled (8 layers)
            w = w_ref[l]                        # (PADW, PADW) zero-padded weight (MXU tile)
            vec = v_ref[l]                      # (3, PADW): rows = bias / gamma / beta
            y = jnp.dot(h, w, preferred_element_type=jnp.float32) + vec[0:1, :]
            if bn:
                # LeakyReLU
                y = jnp.where(y > 0, y, NEG_SLOPE * y)
                # BatchNorm1d (training mode): single-pass batch stats,
                # folded into one per-feature scale/shift.
                mean = jnp.sum(y, axis=0, keepdims=True) * inv_n
                msq = jnp.sum(y * y, axis=0, keepdims=True) * inv_n
                var = jnp.maximum(msq - mean * mean, 0.0)
                scale = vec[1:2, :] * jax.lax.rsqrt(var + EPS)    # EUP rsqrt (free slot)
                shift = vec[2:3, :] - mean * scale
                y = y * scale + shift
            h = y
        o_ref[...] = h                          # lane-dense (N, 128) store, unmasked

    return kernel


def _pack_params(layers):
    """Pack all layer params into two lane-padded buffers (2 DMAs total)."""
    L = len(layers)
    wbuf = jnp.zeros((L, PADW, PADW), jnp.float32)
    vbuf = jnp.zeros((L, 3, PADW), jnp.float32)
    for l, (w, b, g, be, _) in enumerate(layers):
        din, dout = w.shape
        wbuf = wbuf.at[l, :din, :dout].set(w)
        vbuf = vbuf.at[l, 0, :dout].set(b)
        if g is not None:
            vbuf = vbuf.at[l, 1, :dout].set(g)
            vbuf = vbuf.at[l, 2, :dout].set(be)
    return wbuf, vbuf


def autoencoder_forward(x, layers):
    """x: (N, input_size) f32.  layers: list of (W_t(in,out), b, gamma|None, beta|None, has_bn)."""
    n, d = x.shape
    assert d <= PADW and all(w.shape[1] <= PADW for (w, *_r) in layers), \
        "single-block kernel handles feature dims <= 128"
    assert n % 8 == 0, "keep batch sublane-aligned (BN stats computed over real rows only)"

    if d < PADW:
        x = jnp.pad(x, ((0, 0), (0, PADW - d)))
    wbuf, vbuf = _pack_params(layers)
    has_bn = tuple(bool(entry[-1]) for entry in layers)
    out_dim = layers[-1][0].shape[1]

    L = len(layers)
    flops = 2 * n * PADW * PADW * L
    transcendentals = sum(has_bn) * PADW                      # one rsqrt lane-row per BN
    bytes_accessed = 4 * (int(x.size) + int(wbuf.size) + int(vbuf.size) + n * PADW)
    vmem = lambda: pl.BlockSpec(memory_space=pltpu.MemorySpace.VMEM)

    out = pl.pallas_call(
        _make_autoencoder_kernel(has_bn, 1.0 / n),
        out_shape=jax.ShapeDtypeStruct((n, PADW), jnp.float32),
        in_specs=[vmem(), vmem(), vmem()],
        out_specs=vmem(),
        cost_estimate=pl.CostEstimate(
            flops=flops,
            transcendentals=transcendentals,
            bytes_accessed=bytes_accessed),
    )(x, wbuf, vbuf)
    return out[:, :out_dim]


def autoencoder_reference(x, layers):
    """Pure-JAX reference mirroring the PyTorch forward (training-mode BatchNorm)."""
    h = x.astype(jnp.float32)
    for (w, b, g, be, bn) in layers:
        h = jnp.dot(h, w) + b[None, :]
        if bn:
            h = jnp.where(h > 0, h, NEG_SLOPE * h)
            mean = jnp.mean(h, axis=0, keepdims=True)
            var = jnp.mean((h - mean) ** 2, axis=0, keepdims=True)
            h = g[None, :] * ((h - mean) * jax.lax.rsqrt(var + EPS)) + be[None, :]
    return h


def init_params(key, input_size, n_hidden, latent_dim):
    """torch-like init: Linear uniform +/- 1/sqrt(fan_in); BatchNorm gamma=1, beta=0.
    Weights stored pre-transposed as (in, out)."""
    enc_dims = [input_size, n_hidden, n_hidden // 2, n_hidden // 4, latent_dim]
    dec_dims = [latent_dim, n_hidden // 4, n_hidden // 2, n_hidden, input_size]

    def linear(k, fan_in, fan_out):
        kw, kb = jax.random.split(k)
        bound = 1.0 / float(fan_in) ** 0.5
        w = jax.random.uniform(kw, (fan_in, fan_out), jnp.float32, -bound, bound)
        b = jax.random.uniform(kb, (fan_out,), jnp.float32, -bound, bound)
        return w, b

    layers = []
    for i in range(4):      # encoder: Linear -> LeakyReLU -> BatchNorm1d
        key, k = jax.random.split(key)
        w, b = linear(k, enc_dims[i], enc_dims[i + 1])
        layers.append((w, b,
                       jnp.ones((enc_dims[i + 1],), jnp.float32),
                       jnp.zeros((enc_dims[i + 1],), jnp.float32),
                       True))
    for i in range(4):      # decoder: 3x (Linear -> LeakyReLU -> BN) + final Linear
        key, k = jax.random.split(key)
        w, b = linear(k, dec_dims[i], dec_dims[i + 1])
        bn = i < 3
        g = jnp.ones((dec_dims[i + 1],), jnp.float32) if bn else None
        be = jnp.zeros((dec_dims[i + 1],), jnp.float32) if bn else None
        layers.append((w, b, g, be, bn))
    return layers


if __name__ == "__main__":
    # Small shapes consistent with the module: flattened images of size 128,
    # hparams n_hidden=64, latent_dim=16, batch of 8.
    batch, input_size, n_hidden, latent_dim = 8, 128, 64, 16

    key = jax.random.PRNGKey(0)
    key, kx = jax.random.split(key)
    x = jax.random.normal(kx, (batch, input_size), jnp.float32)
    layers = init_params(key, input_size, n_hidden, latent_dim)

    out = jax.block_until_ready(autoencoder_forward(x, layers))
    ref = autoencoder_reference(x, layers)

    assert out.shape == (batch, input_size)
    assert jnp.allclose(out, ref, atol=1e-4, rtol=1e-4), "Pallas kernel mismatch vs reference"

    print("KERNEL_OK")
</pallas_src>

<mosaic_0001>
module attributes {stable_mosaic.version = 11 : i64} {
  func.func @kernel(%arg0: memref<8x128xf32, #tpu.memory_space<vmem>>, %arg1: memref<8x128x128xf32, #tpu.memory_space<vmem>>, %arg2: memref<8x3x128xf32, #tpu.memory_space<vmem>>, %arg3: memref<8x128xf32, #tpu.memory_space<vmem>>) attributes {dimension_semantics = [], scalar_prefetch = 0 : i64, scratch_operands = 0 : i64, tpu.core_type = #tpu.core_type<tc>} {
    %c0 = arith.constant 0 : index
    %c0_0 = arith.constant 0 : index
    %0 = vector.load %arg0[%c0, %c0_0] : memref<8x128xf32, #tpu.memory_space<vmem>>, vector<8x128xf32>
    %c0_1 = arith.constant 0 : index
    %c0_2 = arith.constant 0 : index
    %c0_3 = arith.constant 0 : index
    %1 = vector.load %arg1[%c0_1, %c0_2, %c0_3] : memref<8x128x128xf32, #tpu.memory_space<vmem>>, vector<1x128x128xf32>
    %2 = vector.shape_cast %1 : vector<1x128x128xf32> to vector<128x128xf32>
    %c0_4 = arith.constant 0 : index
    %c0_5 = arith.constant 0 : index
    %c0_6 = arith.constant 0 : index
    %3 = vector.load %arg2[%c0_4, %c0_5, %c0_6] : memref<8x3x128xf32, #tpu.memory_space<vmem>>, vector<1x3x128xf32>
    %4 = vector.shape_cast %3 : vector<1x3x128xf32> to vector<3x128xf32>
    %cst = arith.constant dense<0.000000e+00> : vector<8x128xf32>
    %5 = tpu.matmul %0, %2, %cst {dimension_numbers = #tpu.dot_dimension_numbers<[1], [0], [0], [1], [0, 0, 1, 1], [], []>} : vector<8x128xf32>, vector<128x128xf32>, vector<8x128xf32> -> vector<8x128xf32>
    %6 = vector.extract_strided_slice %4 {offsets = [0, 0], sizes = [1, 128], strides = [1, 1]} : vector<3x128xf32> to vector<1x128xf32>
    %7 = vector.broadcast %6 : vector<1x128xf32> to vector<8x128xf32>
    %8 = arith.addf %5, %7 : vector<8x128xf32>
    %cst_7 = arith.constant 0.000000e+00 : f32
    %9 = vector.broadcast %cst_7 : f32 to vector<8x128xf32>
    %10 = arith.cmpf ogt, %8, %9 : vector<8x128xf32>
    %cst_8 = arith.constant 0.00999999977 : f32
    %11 = vector.broadcast %cst_8 : f32 to vector<8x128xf32>
    %12 = arith.mulf %11, %8 : vector<8x128xf32>
    %13 = arith.select %10, %8, %12 : vector<8x128xi1>, vector<8x128xf32>
    %cst_9 = arith.constant dense<0.000000e+00> : vector<128xf32>
    %14 = vector.multi_reduction <add>, %13, %cst_9 [0] : vector<8x128xf32> to vector<128xf32>
    %15 = vector.shape_cast %14 : vector<128xf32> to vector<1x128xf32>
    %cst_10 = arith.constant 1.250000e-01 : f32
    %16 = vector.broadcast %cst_10 : f32 to vector<1x128xf32>
    %17 = arith.mulf %15, %16 : vector<1x128xf32>
    %18 = arith.mulf %13, %13 : vector<8x128xf32>
    %cst_11 = arith.constant dense<0.000000e+00> : vector<128xf32>
    %19 = vector.multi_reduction <add>, %18, %cst_11 [0] : vector<8x128xf32> to vector<128xf32>
    %20 = vector.shape_cast %19 : vector<128xf32> to vector<1x128xf32>
    %cst_12 = arith.constant 1.250000e-01 : f32
    %21 = vector.broadcast %cst_12 : f32 to vector<1x128xf32>
    %22 = arith.mulf %20, %21 : vector<1x128xf32>
    %23 = arith.mulf %17, %17 : vector<1x128xf32>
    %24 = arith.subf %22, %23 : vector<1x128xf32>
    %cst_13 = arith.constant 0.000000e+00 : f32
    %25 = vector.broadcast %cst_13 : f32 to vector<1x128xf32>
    %26 = arith.maximumf %24, %25 : vector<1x128xf32>
    %27 = vector.extract_strided_slice %4 {offsets = [1, 0], sizes = [1, 128], strides = [1, 1]} : vector<3x128xf32> to vector<1x128xf32>
    %cst_14 = arith.constant 9.99999974E-6 : f32
    %28 = vector.broadcast %cst_14 : f32 to vector<1x128xf32>
    %29 = arith.addf %26, %28 : vector<1x128xf32>
    %30 = math.rsqrt %29 : vector<1x128xf32>
    %31 = arith.mulf %27, %30 : vector<1x128xf32>
    %32 = vector.extract_strided_slice %4 {offsets = [2, 0], sizes = [1, 128], strides = [1, 1]} : vector<3x128xf32> to vector<1x128xf32>
    %33 = arith.mulf %17, %31 : vector<1x128xf32>
    %34 = arith.subf %32, %33 : vector<1x128xf32>
    %35 = vector.broadcast %31 : vector<1x128xf32> to vector<8x128xf32>
    %36 = arith.mulf %13, %35 : vector<8x128xf32>
    %37 = vector.broadcast %34 : vector<1x128xf32> to vector<8x128xf32>
    %38 = arith.addf %36, %37 : vector<8x128xf32>
    %c1 = arith.constant 1 : index
    %c0_15 = arith.constant 0 : index
    %c0_16 = arith.constant 0 : index
    %39 = vector.load %arg1[%c1, %c0_15, %c0_16] : memref<8x128x128xf32, #tpu.memory_space<vmem>>, vector<1x128x128xf32>
    %40 = vector.shape_cast %39 : vector<1x128x128xf32> to vector<128x128xf32>
    %c1_17 = arith.constant 1 : index
    %c0_18 = arith.constant 0 : index
    %c0_19 = arith.constant 0 : index
    %41 = vector.load %arg2[%c1_17, %c0_18, %c0_19] : memref<8x3x128xf32, #tpu.memory_space<vmem>>, vector<1x3x128xf32>
    %42 = vector.shape_cast %41 : vector<1x3x128xf32> to vector<3x128xf32>
    %cst_20 = arith.constant dense<0.000000e+00> : vector<8x128xf32>
    %43 = tpu.matmul %38, %40, %cst_20 {dimension_numbers = #tpu.dot_dimension_numbers<[1], [0], [0], [1], [0, 0, 1, 1], [], []>} : vector<8x128xf32>, vector<128x128xf32>, vector<8x128xf32> -> vector<8x128xf32>
    %44 = vector.extract_strided_slice %42 {offsets = [0, 0], sizes = [1, 128], strides = [1, 1]} : vector<3x128xf32> to vector<1x128xf32>
    %45 = vector.broadcast %44 : vector<1x128xf32> to vector<8x128xf32>
    %46 = arith.addf %43, %45 : vector<8x128xf32>
    %cst_21 = arith.constant 0.000000e+00 : f32
    %47 = vector.broadcast %cst_21 : f32 to vector<8x128xf32>
    %48 = arith.cmpf ogt, %46, %47 : vector<8x128xf32>
    %cst_22 = arith.constant 0.00999999977 : f32
    %49 = vector.broadcast %cst_22 : f32 to vector<8x128xf32>
    %50 = arith.mulf %49, %46 : vector<8x128xf32>
    %51 = arith.select %48, %46, %50 : vector<8x128xi1>, vector<8x128xf32>
    %cst_23 = arith.constant dense<0.000000e+00> : vector<128xf32>
    %52 = vector.multi_reduction <add>, %51, %cst_23 [0] : vector<8x128xf32> to vector<128xf32>
    %53 = vector.shape_cast %52 : vector<128xf32> to vector<1x128xf32>
    %cst_24 = arith.constant 1.250000e-01 : f32
    %54 = vector.broadcast %cst_24 : f32 to vector<1x128xf32>
    %55 = arith.mulf %53, %54 : vector<1x128xf32>
    %56 = arith.mulf %51, %51 : vector<8x128xf32>
    %cst_25 = arith.constant dense<0.000000e+00> : vector<128xf32>
    %57 = vector.multi_reduction <add>, %56, %cst_25 [0] : vector<8x128xf32> to vector<128xf32>
    %58 = vector.shape_cast %57 : vector<128xf32> to vector<1x128xf32>
    %cst_26 = arith.constant 1.250000e-01 : f32
    %59 = vector.broadcast %cst_26 : f32 to vector<1x128xf32>
    %60 = arith.mulf %58, %59 : vector<1x128xf32>
    %61 = arith.mulf %55, %55 : vector<1x128xf32>
    %62 = arith.subf %60, %61 : vector<1x128xf32>
    %cst_27 = arith.constant 0.000000e+00 : f32
    %63 = vector.broadcast %cst_27 : f32 to vector<1x128xf32>
    %64 = arith.maximumf %62, %63 : vector<1x128xf32>
    %65 = vector.extract_strided_slice %42 {offsets = [1, 0], sizes = [1, 128], strides = [1, 1]} : vector<3x128xf32> to vector<1x128xf32>
    %cst_28 = arith.constant 9.99999974E-6 : f32
    %66 = vector.broadcast %cst_28 : f32 to vector<1x128xf32>
    %67 = arith.addf %64, %66 : vector<1x128xf32>
    %68 = math.rsqrt %67 : vector<1x128xf32>
    %69 = arith.mulf %65, %68 : vector<1x128xf32>
    %70 = vector.extract_strided_slice %42 {offsets = [2, 0], sizes = [1, 128], strides = [1, 1]} : vector<3x128xf32> to vector<1x128xf32>
    %71 = arith.mulf %55, %69 : vector<1x128xf32>
    %72 = arith.subf %70, %71 : vector<1x128xf32>
    %73 = vector.broadcast %69 : vector<1x128xf32> to vector<8x128xf32>
    %74 = arith.mulf %51, %73 : vector<8x128xf32>
    %75 = vector.broadcast %72 : vector<1x128xf32> to vector<8x128xf32>
    %76 = arith.addf %74, %75 : vector<8x128xf32>
    %c2 = arith.constant 2 : index
    %c0_29 = arith.constant 0 : index
    %c0_30 = arith.constant 0 : index
    %77 = vector.load %arg1[%c2, %c0_29, %c0_30] : memref<8x128x128xf32, #tpu.memory_space<vmem>>, vector<1x128x128xf32>
    %78 = vector.shape_cast %77 : vector<1x128x128xf32> to vector<128x128xf32>
    %c2_31 = arith.constant 2 : index
    %c0_32 = arith.constant 0 : index
    %c0_33 = arith.constant 0 : index
    %79 = vector.load %arg2[%c2_31, %c0_32, %c0_33] : memref<8x3x128xf32, #tpu.memory_space<vmem>>, vector<1x3x128xf32>
    %80 = vector.shape_cast %79 : vector<1x3x128xf32> to vector<3x128xf32>
    %cst_34 = arith.constant dense<0.000000e+00> : vector<8x128xf32>
    %81 = tpu.matmul %76, %78, %cst_34 {dimension_numbers = #tpu.dot_dimension_numbers<[1], [0], [0], [1], [0, 0, 1, 1], [], []>} : vector<8x128xf32>, vector<128x128xf32>, vector<8x128xf32> -> vector<8x128xf32>
    %82 = vector.extract_strided_slice %80 {offsets = [0, 0], sizes = [1, 128], strides = [1, 1]} : vector<3x128xf32> to vector<1x128xf32>
    %83 = vector.broadcast %82 : vector<1x128xf32> to vector<8x128xf32>
    %84 = arith.addf %81, %83 : vector<8x128xf32>
    %cst_35 = arith.constant 0.000000e+00 : f32
    %85 = vector.broadcast %cst_35 : f32 to vector<8x128xf32>
    %86 = arith.cmpf ogt, %84, %85 : vector<8x128xf32>
    %cst_36 = arith.constant 0.00999999977 : f32
    %87 = vector.broadcast %cst_36 : f32 to vector<8x128xf32>
    %88 = arith.mulf %87, %84 : vector<8x128xf32>
    %89 = arith.select %86, %84, %88 : vector<8x128xi1>, vector<8x128xf32>
    %cst_37 = arith.constant dense<0.000000e+00> : vector<128xf32>
    %90 = vector.multi_reduction <add>, %89, %cst_37 [0] : vector<8x128xf32> to vector<128xf32>
    %91 = vector.shape_cast %90 : vector<128xf32> to vector<1x128xf32>
    %cst_38 = arith.constant 1.250000e-01 : f32
    %92 = vector.broadcast %cst_38 : f32 to vector<1x128xf32>
    %93 = arith.mulf %91, %92 : vector<1x128xf32>
    %94 = arith.mulf %89, %89 : vector<8x128xf32>
    %cst_39 = arith.constant dense<0.000000e+00> : vector<128xf32>
    %95 = vector.multi_reduction <add>, %94, %cst_39 [0] : vector<8x128xf32> to vector<128xf32>
    %96 = vector.shape_cast %95 : vector<128xf32> to vector<1x128xf32>
    %cst_40 = arith.constant 1.250000e-01 : f32
    %97 = vector.broadcast %cst_40 : f32 to vector<1x128xf32>
    %98 = arith.mulf %96, %97 : vector<1x128xf32>
    %99 = arith.mulf %93, %93 : vector<1x128xf32>
    %100 = arith.subf %98, %99 : vector<1x128xf32>
    %cst_41 = arith.constant 0.000000e+00 : f32
    %101 = vector.broadcast %cst_41 : f32 to vector<1x128xf32>
    %102 = arith.maximumf %100, %101 : vector<1x128xf32>
    %103 = vector.extract_strided_slice %80 {offsets = [1, 0], sizes = [1, 128], strides = [1, 1]} : vector<3x128xf32> to vector<1x128xf32>
    %cst_42 = arith.constant 9.99999974E-6 : f32
    %104 = vector.broadcast %cst_42 : f32 to vector<1x128xf32>
    %105 = arith.addf %102, %104 : vector<1x128xf32>
    %106 = math.rsqrt %105 : vector<1x128xf32>
    %107 = arith.mulf %103, %106 : vector<1x128xf32>
    %108 = vector.extract_strided_slice %80 {offsets = [2, 0], sizes = [1, 128], strides = [1, 1]} : vector<3x128xf32> to vector<1x128xf32>
    %109 = arith.mulf %93, %107 : vector<1x128xf32>
    %110 = arith.subf %108, %109 : vector<1x128xf32>
    %111 = vector.broadcast %107 : vector<1x128xf32> to vector<8x128xf32>
    %112 = arith.mulf %89, %111 : vector<8x128xf32>
    %113 = vector.broadcast %110 : vector<1x128xf32> to vector<8x128xf32>
    %114 = arith.addf %112, %113 : vector<8x128xf32>
    %c3 = arith.constant 3 : index
    %c0_43 = arith.constant 0 : index
    %c0_44 = arith.constant 0 : index
    %115 = vector.load %arg1[%c3, %c0_43, %c0_44] : memref<8x128x128xf32, #tpu.memory_space<vmem>>, vector<1x128x128xf32>
    %116 = vector.shape_cast %115 : vector<1x128x128xf32> to vector<128x128xf32>
    %c3_45 = arith.constant 3 : index
    %c0_46 = arith.constant 0 : index
    %c0_47 = arith.constant 0 : index
    %117 = vector.load %arg2[%c3_45, %c0_46, %c0_47] : memref<8x3x128xf32, #tpu.memory_space<vmem>>, vector<1x3x128xf32>
    %118 = vector.shape_cast %117 : vector<1x3x128xf32> to vector<3x128xf32>
    %cst_48 = arith.constant dense<0.000000e+00> : vector<8x128xf32>
    %119 = tpu.matmul %114, %116, %cst_48 {dimension_numbers = #tpu.dot_dimension_numbers<[1], [0], [0], [1], [0, 0, 1, 1], [], []>} : vector<8x128xf32>, vector<128x128xf32>, vector<8x128xf32> -> vector<8x128xf32>
    %120 = vector.extract_strided_slice %118 {offsets = [0, 0], sizes = [1, 128], strides = [1, 1]} : vector<3x128xf32> to vector<1x128xf32>
    %121 = vector.broadcast %120 : vector<1x128xf32> to vector<8x128xf32>
    %122 = arith.addf %119, %121 : vector<8x128xf32>
    %cst_49 = arith.constant 0.000000e+00 : f32
    %123 = vector.broadcast %cst_49 : f32 to vector<8x128xf32>
    %124 = arith.cmpf ogt, %122, %123 : vector<8x128xf32>
    %cst_50 = arith.constant 0.00999999977 : f32
    %125 = vector.broadcast %cst_50 : f32 to vector<8x128xf32>
    %126 = arith.mulf %125, %122 : vector<8x128xf32>
    %127 = arith.select %124, %122, %126 : vector<8x128xi1>, vector<8x128xf32>
    %cst_51 = arith.constant dense<0.000000e+00> : vector<128xf32>
    %128 = vector.multi_reduction <add>, %127, %cst_51 [0] : vector<8x128xf32> to vector<128xf32>
    %129 = vector.shape_cast %128 : vector<128xf32> to vector<1x128xf32>
    %cst_52 = arith.constant 1.250000e-01 : f32
    %130 = vector.broadcast %cst_52 : f32 to vector<1x128xf32>
    %131 = arith.mulf %129, %130 : vector<1x128xf32>
    %132 = arith.mulf %127, %127 : vector<8x128xf32>
    %cst_53 = arith.constant dense<0.000000e+00> : vector<128xf32>
    %133 = vector.multi_reduction <add>, %132, %cst_53 [0] : vector<8x128xf32> to vector<128xf32>
    %134 = vector.shape_cast %133 : vector<128xf32> to vector<1x128xf32>
    %cst_54 = arith.constant 1.250000e-01 : f32
    %135 = vector.broadcast %cst_54 : f32 to vector<1x128xf32>
    %136 = arith.mulf %134, %135 : vector<1x128xf32>
    %137 = arith.mulf %131, %131 : vector<1x128xf32>
    %138 = arith.subf %136, %137 : vector<1x128xf32>
    %cst_55 = arith.constant 0.000000e+00 : f32
    %139 = vector.broadcast %cst_55 : f32 to vector<1x128xf32>
    %140 = arith.maximumf %138, %139 : vector<1x128xf32>
    %141 = vector.extract_strided_slice %118 {offsets = [1, 0], sizes = [1, 128], strides = [1, 1]} : vector<3x128xf32> to vector<1x128xf32>
    %cst_56 = arith.constant 9.99999974E-6 : f32
    %142 = vector.broadcast %cst_56 : f32 to vector<1x128xf32>
    %143 = arith.addf %140, %142 : vector<1x128xf32>
    %144 = math.rsqrt %143 : vector<1x128xf32>
    %145 = arith.mulf %141, %144 : vector<1x128xf32>
    %146 = vector.extract_strided_slice %118 {offsets = [2, 0], sizes = [1, 128], strides = [1, 1]} : vector<3x128xf32> to vector<1x128xf32>
    %147 = arith.mulf %131, %145 : vector<1x128xf32>
    %148 = arith.subf %146, %147 : vector<1x128xf32>
    %149 = vector.broadcast %145 : vector<1x128xf32> to vector<8x128xf32>
    %150 = arith.mulf %127, %149 : vector<8x128xf32>
    %151 = vector.broadcast %148 : vector<1x128xf32> to vector<8x128xf32>
    %152 = arith.addf %150, %151 : vector<8x128xf32>
    %c4 = arith.constant 4 : index
    %c0_57 = arith.constant 0 : index
    %c0_58 = arith.constant 0 : index
    %153 = vector.load %arg1[%c4, %c0_57, %c0_58] : memref<8x128x128xf32, #tpu.memory_space<vmem>>, vector<1x128x128xf32>
    %154 = vector.shape_cast %153 : vector<1x128x128xf32> to vector<128x128xf32>
    %c4_59 = arith.constant 4 : index
    %c0_60 = arith.constant 0 : index
    %c0_61 = arith.constant 0 : index
    %155 = vector.load %arg2[%c4_59, %c0_60, %c0_61] : memref<8x3x128xf32, #tpu.memory_space<vmem>>, vector<1x3x128xf32>
    %156 = vector.shape_cast %155 : vector<1x3x128xf32> to vector<3x128xf32>
    %cst_62 = arith.constant dense<0.000000e+00> : vector<8x128xf32>
    %157 = tpu.matmul %152, %154, %cst_62 {dimension_numbers = #tpu.dot_dimension_numbers<[1], [0], [0], [1], [0, 0, 1, 1], [], []>} : vector<8x128xf32>, vector<128x128xf32>, vector<8x128xf32> -> vector<8x128xf32>
    %158 = vector.extract_strided_slice %156 {offsets = [0, 0], sizes = [1, 128], strides = [1, 1]} : vector<3x128xf32> to vector<1x128xf32>
    %159 = vector.broadcast %158 : vector<1x128xf32> to vector<8x128xf32>
    %160 = arith.addf %157, %159 : vector<8x128xf32>
    %cst_63 = arith.constant 0.000000e+00 : f32
    %161 = vector.broadcast %cst_63 : f32 to vector<8x128xf32>
    %162 = arith.cmpf ogt, %160, %161 : vector<8x128xf32>
    %cst_64 = arith.constant 0.00999999977 : f32
    %163 = vector.broadcast %cst_64 : f32 to vector<8x128xf32>
    %164 = arith.mulf %163, %160 : vector<8x128xf32>
    %165 = arith.select %162, %160, %164 : vector<8x128xi1>, vector<8x128xf32>
    %cst_65 = arith.constant dense<0.000000e+00> : vector<128xf32>
    %166 = vector.multi_reduction <add>, %165, %cst_65 [0] : vector<8x128xf32> to vector<128xf32>
    %167 = vector.shape_cast %166 : vector<128xf32> to vector<1x128xf32>
    %cst_66 = arith.constant 1.250000e-01 : f32
    %168 = vector.broadcast %cst_66 : f32 to vector<1x128xf32>
    %169 = arith.mulf %167, %168 : vector<1x128xf32>
    %170 = arith.mulf %165, %165 : vector<8x128xf32>
    %cst_67 = arith.constant dense<0.000000e+00> : vector<128xf32>
    %171 = vector.multi_reduction <add>, %170, %cst_67 [0] : vector<8x128xf32> to vector<128xf32>
    %172 = vector.shape_cast %171 : vector<128xf32> to vector<1x128xf32>
    %cst_68 = arith.constant 1.250000e-01 : f32
    %173 = vector.broadcast %cst_68 : f32 to vector<1x128xf32>
    %174 = arith.mulf %172, %173 : vector<1x128xf32>
    %175 = arith.mulf %169, %169 : vector<1x128xf32>
    %176 = arith.subf %174, %175 : vector<1x128xf32>
    %cst_69 = arith.constant 0.000000e+00 : f32
    %177 = vector.broadcast %cst_69 : f32 to vector<1x128xf32>
    %178 = arith.maximumf %176, %177 : vector<1x128xf32>
    %179 = vector.extract_strided_slice %156 {offsets = [1, 0], sizes = [1, 128], strides = [1, 1]} : vector<3x128xf32> to vector<1x128xf32>
    %cst_70 = arith.constant 9.99999974E-6 : f32
    %180 = vector.broadcast %cst_70 : f32 to vector<1x128xf32>
    %181 = arith.addf %178, %180 : vector<1x128xf32>
    %182 = math.rsqrt %181 : vector<1x128xf32>
    %183 = arith.mulf %179, %182 : vector<1x128xf32>
    %184 = vector.extract_strided_slice %156 {offsets = [2, 0], sizes = [1, 128], strides = [1, 1]} : vector<3x128xf32> to vector<1x128xf32>
    %185 = arith.mulf %169, %183 : vector<1x128xf32>
    %186 = arith.subf %184, %185 : vector<1x128xf32>
    %187 = vector.broadcast %183 : vector<1x128xf32> to vector<8x128xf32>
    %188 = arith.mulf %165, %187 : vector<8x128xf32>
    %189 = vector.broadcast %186 : vector<1x128xf32> to vector<8x128xf32>
    %190 = arith.addf %188, %189 : vector<8x128xf32>
    %c5 = arith.constant 5 : index
    %c0_71 = arith.constant 0 : index
    %c0_72 = arith.constant 0 : index
    %191 = vector.load %arg1[%c5, %c0_71, %c0_72] : memref<8x128x128xf32, #tpu.memory_space<vmem>>, vector<1x128x128xf32>
    %192 = vector.shape_cast %191 : vector<1x128x128xf32> to vector<128x128xf32>
    %c5_73 = arith.constant 5 : index
    %c0_74 = arith.constant 0 : index
    %c0_75 = arith.constant 0 : index
    %193 = vector.load %arg2[%c5_73, %c0_74, %c0_75] : memref<8x3x128xf32, #tpu.memory_space<vmem>>, vector<1x3x128xf32>
    %194 = vector.shape_cast %193 : vector<1x3x128xf32> to vector<3x128xf32>
    %cst_76 = arith.constant dense<0.000000e+00> : vector<8x128xf32>
    %195 = tpu.matmul %190, %192, %cst_76 {dimension_numbers = #tpu.dot_dimension_numbers<[1], [0], [0], [1], [0, 0, 1, 1], [], []>} : vector<8x128xf32>, vector<128x128xf32>, vector<8x128xf32> -> vector<8x128xf32>
    %196 = vector.extract_strided_slice %194 {offsets = [0, 0], sizes = [1, 128], strides = [1, 1]} : vector<3x128xf32> to vector<1x128xf32>
    %197 = vector.broadcast %196 : vector<1x128xf32> to vector<8x128xf32>
    %198 = arith.addf %195, %197 : vector<8x128xf32>
    %cst_77 = arith.constant 0.000000e+00 : f32
    %199 = vector.broadcast %cst_77 : f32 to vector<8x128xf32>
    %200 = arith.cmpf ogt, %198, %199 : vector<8x128xf32>
    %cst_78 = arith.constant 0.00999999977 : f32
    %201 = vector.broadcast %cst_78 : f32 to vector<8x128xf32>
    %202 = arith.mulf %201, %198 : vector<8x128xf32>
    %203 = arith.select %200, %198, %202 : vector<8x128xi1>, vector<8x128xf32>
    %cst_79 = arith.constant dense<0.000000e+00> : vector<128xf32>
    %204 = vector.multi_reduction <add>, %203, %cst_79 [0] : vector<8x128xf32> to vector<128xf32>
    %205 = vector.shape_cast %204 : vector<128xf32> to vector<1x128xf32>
    %cst_80 = arith.constant 1.250000e-01 : f32
    %206 = vector.broadcast %cst_80 : f32 to vector<1x128xf32>
    %207 = arith.mulf %205, %206 : vector<1x128xf32>
    %208 = arith.mulf %203, %203 : vector<8x128xf32>
    %cst_81 = arith.constant dense<0.000000e+00> : vector<128xf32>
    %209 = vector.multi_reduction <add>, %208, %cst_81 [0] : vector<8x128xf32> to vector<128xf32>
    %210 = vector.shape_cast %209 : vector<128xf32> to vector<1x128xf32>
    %cst_82 = arith.constant 1.250000e-01 : f32
    %211 = vector.broadcast %cst_82 : f32 to vector<1x128xf32>
    %212 = arith.mulf %210, %211 : vector<1x128xf32>
    %213 = arith.mulf %207, %207 : vector<1x128xf32>
    %214 = arith.subf %212, %213 : vector<1x128xf32>
    %cst_83 = arith.constant 0.000000e+00 : f32
    %215 = vector.broadcast %cst_83 : f32 to vector<1x128xf32>
    %216 = arith.maximumf %214, %215 : vector<1x128xf32>
    %217 = vector.extract_strided_slice %194 {offsets = [1, 0], sizes = [1, 128], strides = [1, 1]} : vector<3x128xf32> to vector<1x128xf32>
    %cst_84 = arith.constant 9.99999974E-6 : f32
    %218 = vector.broadcast %cst_84 : f32 to vector<1x128xf32>
    %219 = arith.addf %216, %218 : vector<1x128xf32>
    %220 = math.rsqrt %219 : vector<1x128xf32>
    %221 = arith.mulf %217, %220 : vector<1x128xf32>
    %222 = vector.extract_strided_slice %194 {offsets = [2, 0], sizes = [1, 128], strides = [1, 1]} : vector<3x128xf32> to vector<1x128xf32>
    %223 = arith.mulf %207, %221 : vector<1x128xf32>
    %224 = arith.subf %222, %223 : vector<1x128xf32>
    %225 = vector.broadcast %221 : vector<1x128xf32> to vector<8x128xf32>
    %226 = arith.mulf %203, %225 : vector<8x128xf32>
    %227 = vector.broadcast %224 : vector<1x128xf32> to vector<8x128xf32>
    %228 = arith.addf %226, %227 : vector<8x128xf32>
    %c6 = arith.constant 6 : index
    %c0_85 = arith.constant 0 : index
    %c0_86 = arith.constant 0 : index
    %229 = vector.load %arg1[%c6, %c0_85, %c0_86] : memref<8x128x128xf32, #tpu.memory_space<vmem>>, vector<1x128x128xf32>
    %230 = vector.shape_cast %229 : vector<1x128x128xf32> to vector<128x128xf32>
    %c6_87 = arith.constant 6 : index
    %c0_88 = arith.constant 0 : index
    %c0_89 = arith.constant 0 : index
    %231 = vector.load %arg2[%c6_87, %c0_88, %c0_89] : memref<8x3x128xf32, #tpu.memory_space<vmem>>, vector<1x3x128xf32>
    %232 = vector.shape_cast %231 : vector<1x3x128xf32> to vector<3x128xf32>
    %cst_90 = arith.constant dense<0.000000e+00> : vector<8x128xf32>
    %233 = tpu.matmul %228, %230, %cst_90 {dimension_numbers = #tpu.dot_dimension_numbers<[1], [0], [0], [1], [0, 0, 1, 1], [], []>} : vector<8x128xf32>, vector<128x128xf32>, vector<8x128xf32> -> vector<8x128xf32>
    %234 = vector.extract_strided_slice %232 {offsets = [0, 0], sizes = [1, 128], strides = [1, 1]} : vector<3x128xf32> to vector<1x128xf32>
    %235 = vector.broadcast %234 : vector<1x128xf32> to vector<8x128xf32>
    %236 = arith.addf %233, %235 : vector<8x128xf32>
    %cst_91 = arith.constant 0.000000e+00 : f32
    %237 = vector.broadcast %cst_91 : f32 to vector<8x128xf32>
    %238 = arith.cmpf ogt, %236, %237 : vector<8x128xf32>
    %cst_92 = arith.constant 0.00999999977 : f32
    %239 = vector.broadcast %cst_92 : f32 to vector<8x128xf32>
    %240 = arith.mulf %239, %236 : vector<8x128xf32>
    %241 = arith.select %238, %236, %240 : vector<8x128xi1>, vector<8x128xf32>
    %cst_93 = arith.constant dense<0.000000e+00> : vector<128xf32>
    %242 = vector.multi_reduction <add>, %241, %cst_93 [0] : vector<8x128xf32> to vector<128xf32>
    %243 = vector.shape_cast %242 : vector<128xf32> to vector<1x128xf32>
    %cst_94 = arith.constant 1.250000e-01 : f32
    %244 = vector.broadcast %cst_94 : f32 to vector<1x128xf32>
    %245 = arith.mulf %243, %244 : vector<1x128xf32>
    %246 = arith.mulf %241, %241 : vector<8x128xf32>
    %cst_95 = arith.constant dense<0.000000e+00> : vector<128xf32>
    %247 = vector.multi_reduction <add>, %246, %cst_95 [0] : vector<8x128xf32> to vector<128xf32>
    %248 = vector.shape_cast %247 : vector<128xf32> to vector<1x128xf32>
    %cst_96 = arith.constant 1.250000e-01 : f32
    %249 = vector.broadcast %cst_96 : f32 to vector<1x128xf32>
    %250 = arith.mulf %248, %249 : vector<1x128xf32>
    %251 = arith.mulf %245, %245 : vector<1x128xf32>
    %252 = arith.subf %250, %251 : vector<1x128xf32>
    %cst_97 = arith.constant 0.000000e+00 : f32
    %253 = vector.broadcast %cst_97 : f32 to vector<1x128xf32>
    %254 = arith.maximumf %252, %253 : vector<1x128xf32>
    %255 = vector.extract_strided_slice %232 {offsets = [1, 0], sizes = [1, 128], strides = [1, 1]} : vector<3x128xf32> to vector<1x128xf32>
    %cst_98 = arith.constant 9.99999974E-6 : f32
    %256 = vector.broadcast %cst_98 : f32 to vector<1x128xf32>
    %257 = arith.addf %254, %256 : vector<1x128xf32>
    %258 = math.rsqrt %257 : vector<1x128xf32>
    %259 = arith.mulf %255, %258 : vector<1x128xf32>
    %260 = vector.extract_strided_slice %232 {offsets = [2, 0], sizes = [1, 128], strides = [1, 1]} : vector<3x128xf32> to vector<1x128xf32>
    %261 = arith.mulf %245, %259 : vector<1x128xf32>
    %262 = arith.subf %260, %261 : vector<1x128xf32>
    %263 = vector.broadcast %259 : vector<1x128xf32> to vector<8x128xf32>
    %264 = arith.mulf %241, %263 : vector<8x128xf32>
    %265 = vector.broadcast %262 : vector<1x128xf32> to vector<8x128xf32>
    %266 = arith.addf %264, %265 : vector<8x128xf32>
    %c7 = arith.constant 7 : index
    %c0_99 = arith.constant 0 : index
    %c0_100 = arith.constant 0 : index
    %267 = vector.load %arg1[%c7, %c0_99, %c0_100] : memref<8x128x128xf32, #tpu.memory_space<vmem>>, vector<1x128x128xf32>
    %268 = vector.shape_cast %267 : vector<1x128x128xf32> to vector<128x128xf32>
    %c7_101 = arith.constant 7 : index
    %c0_102 = arith.constant 0 : index
    %c0_103 = arith.constant 0 : index
    %269 = vector.load %arg2[%c7_101, %c0_102, %c0_103] : memref<8x3x128xf32, #tpu.memory_space<vmem>>, vector<1x3x128xf32>
    %270 = vector.shape_cast %269 : vector<1x3x128xf32> to vector<3x128xf32>
    %cst_104 = arith.constant dense<0.000000e+00> : vector<8x128xf32>
    %271 = tpu.matmul %266, %268, %cst_104 {dimension_numbers = #tpu.dot_dimension_numbers<[1], [0], [0], [1], [0, 0, 1, 1], [], []>} : vector<8x128xf32>, vector<128x128xf32>, vector<8x128xf32> -> vector<8x128xf32>
    %272 = vector.extract_strided_slice %270 {offsets = [0, 0], sizes = [1, 128], strides = [1, 1]} : vector<3x128xf32> to vector<1x128xf32>
    %273 = vector.broadcast %272 : vector<1x128xf32> to vector<8x128xf32>
    %274 = arith.addf %271, %273 : vector<8x128xf32>
    %c0_105 = arith.constant 0 : index
    %c0_106 = arith.constant 0 : index
    %275 = vector.load %arg3[%c0_105, %c0_106] : memref<8x128xf32, #tpu.memory_space<vmem>>, vector<8x128xf32>
    tpu.vector_store %arg3[%c0_105, %c0_106], %274 {strides = array<i32>} : memref<8x128xf32, #tpu.memory_space<vmem>>, vector<8x128xf32>,
    return
  }
}

</mosaic_0001>

<llo_original>
// kernel: tpu_custom_call.1
$region0: #{tpu_custom_call.1}
  #allocation0 [shape = 'u32[]', space=smem, size = 0x4, offset = 0x4, fixed_abs, tag = 'smem constant byte address 0x4 - core index']
  #allocation1 [shape = 'u32[144,128]{1,0:T(1,128)}', space=vmem, size = 0x12000, scoped, tag = 'internal scratch']
  %s0 = inlined_call_operand.vmem [shape: f32[8,128], index: 0, kind: input, shape index: {}]
  %s1 = inlined_call_operand.hbm [shape: f32[8,128,128], index: 1, kind: input, shape index: {}]
  %s2 = inlined_call_operand.vmem [shape: f32[8,3,128], index: 2, kind: input, shape index: {}]
  %s3 = inlined_call_operand.hbm [shape: f32[8,128], index: 3, kind: output, shape index: {}]
  %s4 = sld [smem:[#allocation0]]
  $region26: #{tpu_custom_call.1} parent=0
    _
  %s6 = ssub.s32 1, %s4
  %s7 = scalar_select 0, %s6, %s4
  $region1: #{tpu_custom_call.1} parent=0
    #allocation2 [shape = 'u8[524288]{0}', space=vmem, size = 0x80000, scoped, tag = 'input window, operand 1, single buffered']
    #allocation3 [shape = 's32[1]{0}', space=sflag, size = 0x4, scoped, tag = 'scoped memory for tpu_custom_call.1']
    #allocation4 [shape = 's32[1]{0}', space=sflag, size = 0x4, scoped, tag = 'scoped memory for tpu_custom_call.1']
    #allocation5 [shape = 'u8[4096]{0}', space=vmem, size = 0x1000, scoped, tag = 'output window, operand 0, single buffered']
    %8 = vsyncpa [#allocation3], 0
    %9 = vsyncpa [#allocation4], 0
    // Predicated region
    $region2: #{tpu_custom_call.1} parent=1 // pred_check
      _
    $region3: #{tpu_custom_call.1} parent=1 // pred_check_branch
      %11 = sbr.rel (0) target = $region5
    $region4: #{tpu_custom_call.1} parent=1 // pred_region
      _
    $region5: #{tpu_custom_call.1} parent=1 // pred_fallthru
      _
    // Predicated region
    $region6: #{tpu_custom_call.1} parent=1 // pred_check
      _
    $region7: #{tpu_custom_call.1} parent=1 // pred_check_branch
      %13 = sbr.rel (0) target = $region9
    $region8: #{tpu_custom_call.1} parent=1 // pred_region
      %s15 = ssub.s32 16384, 16384
      %16 = vsyncadd [#allocation3], %s15
      %s17 = sshll.u32 [#allocation2], 4
      %s18 = int_to_ptr.vmem [resolvable:$true] %s17
      %23 = dma.hbm_to_vmem [thread:$0]  %s1, 16384, %s18, [#allocation3], 128, 128, 8
    $region9: #{tpu_custom_call.1} parent=1 // pred_fallthru
      _
    // Predicated region
    $region10: #{tpu_custom_call.1} parent=1 // pred_check
      _
    $region11: #{tpu_custom_call.1} parent=1 // pred_check_branch
      %25 = sbr.rel (0) target = $region13
    $region12: #{tpu_custom_call.1} parent=1 // pred_region
      _
    $region13: #{tpu_custom_call.1} parent=1 // pred_fallthru
      _
    // Predicated region
    $region14: #{tpu_custom_call.1} parent=1 // pred_check
      _
    $region15: #{tpu_custom_call.1} parent=1 // pred_check_branch
      %27 = sbr.rel (0) target = $region17
    $region16: #{tpu_custom_call.1} parent=1 // pred_region
      %28 = dma.done [#allocation3], 16384
    $region17: #{tpu_custom_call.1} parent=1 // pred_fallthru
      _
    %v29 = vld [vmem:[%s0] sm:$0xff]
    %v30 = vld [vmem:[#allocation2] sm:$0xff]
    %v31 = vld [vmem:[#allocation2 + $0x8] sm:$0xff]
    %v32 = vld [vmem:[#allocation2 + $0x10] sm:$0xff]
    %v33 = vld [vmem:[#allocation2 + $0x18] sm:$0xff]
    %v34 = vld [vmem:[#allocation2 + $0x20] sm:$0xff]
    %v35 = vld [vmem:[#allocation2 + $0x28] sm:$0xff]
    %v36 = vld [vmem:[#allocation2 + $0x30] sm:$0xff]
    %v37 = vld [vmem:[#allocation2 + $0x38] sm:$0xff]
    %v38 = vld [vmem:[#allocation2 + $0x40] sm:$0xff]
    %v39 = vld [vmem:[#allocation2 + $0x48] sm:$0xff]
    %v40 = vld [vmem:[#allocation2 + $0x50] sm:$0xff]
    %v41 = vld [vmem:[#allocation2 + $0x58] sm:$0xff]
    %v42 = vld [vmem:[#allocation2 + $0x60] sm:$0xff]
    %v43 = vld [vmem:[#allocation2 + $0x68] sm:$0xff]
    %v44 = vld [vmem:[#allocation2 + $0x70] sm:$0xff]
    %v45 = vld [vmem:[#allocation2 + $0x78] sm:$0xff]
    %v46 = vld [vmem:[%s2] sm:$0x7]
    %v47 = vlaneseq
    %v48 = vshrl.u32 %v47, 7
    %v49 = vsub.s32 0, %v48
    %v50 = vrot.slane %v46, %v49
    %51 = vmatprep.subr.mxu0 0.0
    %52 = vmatpush1.msra.mxu0 %v30
    %53 = vmatprep.subr.mxu0 0.0
    %54 = vmatpush1.msra.mxu0 %v31
    %55 = vmatprep.subr.mxu0 0.0
    %56 = vmatpush1.msra.mxu0 %v32
    %57 = vmatprep.subr.mxu0 0.0
    %58 = vmatpush1.msra.mxu0 %v33
    %59 = vmatprep.subr.mxu0 0.0
    %60 = vmatpush1.msra.mxu0 %v34
    %61 = vmatprep.subr.mxu0 0.0
    %62 = vmatpush1.msra.mxu0 %v35
    %63 = vmatprep.subr.mxu0 0.0
    %64 = vmatpush1.msra.mxu0 %v36
    %65 = vmatprep.subr.mxu0 0.0
    %66 = vmatpush1.msra.mxu0 %v37
    %67 = vmatprep.subr.mxu0 0.0
    %68 = vmatpush1.msra.mxu0 %v38
    %69 = vmatprep.subr.mxu0 0.0
    %70 = vmatpush1.msra.mxu0 %v39
    %71 = vmatprep.subr.mxu0 0.0
    %72 = vmatpush1.msra.mxu0 %v40
    %73 = vmatprep.subr.mxu0 0.0
    %74 = vmatpush1.msra.mxu0 %v41
    %75 = vmatprep.subr.mxu0 0.0
    %76 = vmatpush1.msra.mxu0 %v42
    %77 = vmatprep.subr.mxu0 0.0
    %78 = vmatpush1.msra.mxu0 %v43
    %79 = vmatprep.subr.mxu0 0.0
    %80 = vmatpush1.msra.mxu0 %v44
    %81 = vmatprep.subr.mxu0 0.0
    %82 = vmatpush1.msra.mxu0 %v45
    %83 = vmatprep.subr.mxu0 0.0
    %84 = vmatpush1.msra.mxu0 0.0
    %85 = vmatprep.subr.mxu0 0.0
    %86 = vmatpush1.msra.mxu0 0.0
    %87 = vmatprep.subr.mxu0 0.0
    %88 = vmatpush1.msra.mxu0 0.0
    %89 = vmatprep.subr.mxu0 0.0
    %90 = vmatpush1.msra.mxu0 0.0
    %91 = vmatprep.subr.mxu0 0.0
    %92 = vmatpush1.msra.mxu0 0.0
    %93 = vmatprep.subr.mxu0 0.0
    %94 = vmatpush1.msra.mxu0 0.0
    %95 = vmatprep.subr.mxu0 0.0
    %96 = vmatpush1.msra.mxu0 0.0
    %97 = vmatprep.subr.mxu0 0.0
    %98 = vmatpush1.msra.mxu0 0.0
    %99 = vmatprep.subr.mxu0 0.0
    %100 = vmatpush1.msra.mxu0 0.0
    %101 = vmatprep.subr.mxu0 0.0
    %102 = vmatpush1.msra.mxu0 0.0
    %103 = vmatprep.subr.mxu0 0.0
    %104 = vmatpush1.msra.mxu0 0.0
    %105 = vmatprep.subr.mxu0 0.0
    %106 = vmatpush1.msra.mxu0 0.0
    %107 = vmatprep.subr.mxu0 0.0
    %108 = vmatpush1.msra.mxu0 0.0
    %109 = vmatprep.subr.mxu0 0.0
    %110 = vmatpush1.msra.mxu0 0.0
    %111 = vmatprep.subr.mxu0 0.0
    %112 = vmatpush1.msra.mxu0 0.0
    %113 = vmatprep.subr.mxu0 0.0
    %114 = vmatpush1.msra.mxu0 0.0
    %115 = vmatprep.mubr.f32.mxu0 0.0
    %116 = vmatmul.mubr.f32.gmra.mrb[0].mxu0 %v29
    %v117 = vpop.f32.mrb[0].mxu0
    %v118 = vadd.f32 %v50, %v117
    %v119 = vpop.f32.mrb[0].mxu0
    %120 = vdwg.mxu0
    %vm121 = vcmp.gt.f32.partialorder %v118, 0.0
    %v122 = vmul.f32 %v118, 0.01
    %v123 = vsel %vm121, %v118, %v122
    %v124 = vrot.slane %v123, 4
    %v125 = vadd.f32 %v123, %v124
    %v126 = vrot.slane %v125, 2
    %v127 = vadd.f32 %v125, %v126
    %v128 = vrot.slane %v127, 1
    %v129 = vadd.f32 %v127, %v128
    %v130 = vmul.f32 %v129, 0.125
    %v131 = vmul.f32 %v123, %v123
    %v132 = vrot.slane %v131, 4
    %v133 = vadd.f32 %v131, %v132
    %v134 = vrot.slane %v133, 2
    %v135 = vadd.f32 %v133, %v134
    %v136 = vrot.slane %v135, 1
    %v137 = vadd.f32 %v135, %v136
    %v138 = vmul.f32 %v137, 0.125
    %v139 = vmul.f32 %v130, %v130
    %v140 = vsub.f32 %v138, %v139
    %v141 = vmax.f32 %v140, 0.0
    %v142 = vadd.f32 %v141, 1e-05
    %v143 = vrsqrt.pop %v142
    %v144 = vmul.f32 %v46, %v143
    %v145 = vmul.f32 %v130, %v144
    %v147 = vrot.slane %v145, 7
    %v149 = vsub.f32 %v46, %v147
    %v150 = vlaneseq
    %v151 = vshrl.u32 %v150, 7
    %v152 = vsub.s32 1, %v151
    %v153 = vrot.slane %v144, %v152
    %v154 = vmul.f32 %v123, %v153
    %v155 = vlaneseq
    %v156 = vshrl.u32 %v155, 7
    %v157 = vsub.s32 2, %v156
    %v158 = vrot.slane %v149, %v157
    %v159 = vadd.f32 %v154, %v158
    %s160 = scalar_lea.vmem [#allocation2], 128
    %v161 = vld [vmem:[%s160] sm:$0xff]
    %v162 = vld [vmem:[%s160 + $0x8] sm:$0xff]
    %v163 = vld [vmem:[%s160 + $0x10] sm:$0xff]
    %v164 = vld [vmem:[%s160 + $0x18] sm:$0xff]
    %v165 = vld [vmem:[%s160 + $0x20] sm:$0xff]
    %v166 = vld [vmem:[%s160 + $0x28] sm:$0xff]
    %v167 = vld [vmem:[%s160 + $0x30] sm:$0xff]
    %v168 = vld [vmem:[%s160 + $0x38] sm:$0xff]
    %v169 = vld [vmem:[%s160 + $0x40] sm:$0xff]
    %v170 = vld [vmem:[%s160 + $0x48] sm:$0xff]
    %v171 = vld [vmem:[%s160 + $0x50] sm:$0xff]
    %v172 = vld [vmem:[%s160 + $0x58] sm:$0xff]
    %v173 = vld [vmem:[%s160 + $0x60] sm:$0xff]
    %v174 = vld [vmem:[%s160 + $0x68] sm:$0xff]
    %v175 = vld [vmem:[%s160 + $0x70] sm:$0xff]
    %v176 = vld [vmem:[%s160 + $0x78] sm:$0xff]
    %s177 = scalar_lea.vmem %s2, 4
    %v178 = vld [vmem:[%s177] sm:$0x7]
    %v179 = vlaneseq
    %v180 = vshrl.u32 %v179, 7
    %v181 = vsub.s32 0, %v180
    %v182 = vrot.slane %v178, %v181
    %183 = vmatprep.subr.mxu0 0.0
    %184 = vmatpush1.msra.mxu0 %v161
    %185 = vmatprep.subr.mxu0 0.0
    %186 = vmatpush1.msra.mxu0 %v162
    %187 = vmatprep.subr.mxu0 0.0
    %188 = vmatpush1.msra.mxu0 %v163
    %189 = vmatprep.subr.mxu0 0.0
    %190 = vmatpush1.msra.mxu0 %v164
    %191 = vmatprep.subr.mxu0 0.0
    %192 = vmatpush1.msra.mxu0 %v165
    %193 = vmatprep.subr.mxu0 0.0
    %194 = vmatpush1.msra.mxu0 %v166
    %195 = vmatprep.subr.mxu0 0.0
    %196 = vmatpush1.msra.mxu0 %v167
    %197 = vmatprep.subr.mxu0 0.0
    %198 = vmatpush1.msra.mxu0 %v168
    %199 = vmatprep.subr.mxu0 0.0
    %200 = vmatpush1.msra.mxu0 %v169
    %201 = vmatprep.subr.mxu0 0.0
    %202 = vmatpush1.msra.mxu0 %v170
    %203 = vmatprep.subr.mxu0 0.0
    %204 = vmatpush1.msra.mxu0 %v171
    %205 = vmatprep.subr.mxu0 0.0
    %206 = vmatpush1.msra.mxu0 %v172
    %207 = vmatprep.subr.mxu0 0.0
    %208 = vmatpush1.msra.mxu0 %v173
    %209 = vmatprep.subr.mxu0 0.0
    %210 = vmatpush1.msra.mxu0 %v174
    %211 = vmatprep.subr.mxu0 0.0
    %212 = vmatpush1.msra.mxu0 %v175
    %213 = vmatprep.subr.mxu0 0.0
    %214 = vmatpush1.msra.mxu0 %v176
    %215 = vmatprep.subr.mxu0 0.0
    %216 = vmatpush1.msra.mxu0 0.0
    %217 = vmatprep.subr.mxu0 0.0
    %218 = vmatpush1.msra.mxu0 0.0
    %219 = vmatprep.subr.mxu0 0.0
    %220 = vmatpush1.msra.mxu0 0.0
    %221 = vmatprep.subr.mxu0 0.0
    %222 = vmatpush1.msra.mxu0 0.0
    %223 = vmatprep.subr.mxu0 0.0
    %224 = vmatpush1.msra.mxu0 0.0
    %225 = vmatprep.subr.mxu0 0.0
    %226 = vmatpush1.msra.mxu0 0.0
    %227 = vmatprep.subr.mxu0 0.0
    %228 = vmatpush1.msra.mxu0 0.0
    %229 = vmatprep.subr.mxu0 0.0
    %230 = vmatpush1.msra.mxu0 0.0
    %231 = vmatprep.subr.mxu0 0.0
    %232 = vmatpush1.msra.mxu0 0.0
    %233 = vmatprep.subr.mxu0 0.0
    %234 = vmatpush1.msra.mxu0 0.0
    %235 = vmatprep.subr.mxu0 0.0
    %236 = vmatpush1.msra.mxu0 0.0
    %237 = vmatprep.subr.mxu0 0.0
    %238 = vmatpush1.msra.mxu0 0.0
    %239 = vmatprep.subr.mxu0 0.0
    %240 = vmatpush1.msra.mxu0 0.0
    %241 = vmatprep.subr.mxu0 0.0
    %242 = vmatpush1.msra.mxu0 0.0
    %243 = vmatprep.subr.mxu0 0.0
    %244 = vmatpush1.msra.mxu0 0.0
    %245 = vmatprep.subr.mxu0 0.0
    %246 = vmatpush1.msra.mxu0 0.0
    %247 = vmatprep.mubr.f32.mxu0 0.0
    %248 = vmatmul.mubr.f32.gmra.mrb[0].mxu0 %v159
    %v249 = vpop.f32.mrb[0].mxu0
    %v250 = vadd.f32 %v182, %v249
    %v251 = vpop.f32.mrb[0].mxu0
    %252 = vdwg.mxu0
    %vm253 = vcmp.gt.f32.partialorder %v250, 0.0
    %v254 = vmul.f32 %v250, 0.01
    %v255 = vsel %vm253, %v250, %v254
    %v256 = vrot.slane %v255, 4
    %v257 = vadd.f32 %v255, %v256
    %v258 = vrot.slane %v257, 2
    %v259 = vadd.f32 %v257, %v258
    %v260 = vrot.slane %v259, 1
    %v261 = vadd.f32 %v259, %v260
    %v262 = vmul.f32 %v261, 0.125
    %v263 = vmul.f32 %v255, %v255
    %v264 = vrot.slane %v263, 4
    %v265 = vadd.f32 %v263, %v264
    %v266 = vrot.slane %v265, 2
    %v267 = vadd.f32 %v265, %v266
    %v268 = vrot.slane %v267, 1
    %v269 = vadd.f32 %v267, %v268
    %v270 = vmul.f32 %v269, 0.125
    %v271 = vmul.f32 %v262, %v262
    %v272 = vsub.f32 %v270, %v271
    %v273 = vmax.f32 %v272, 0.0
    %v274 = vadd.f32 %v273, 1e-05
    %v275 = vrsqrt.pop %v274
    %v276 = vmul.f32 %v178, %v275
    %v277 = vmul.f32 %v262, %v276
    %v279 = vrot.slane %v277, 7
    %v281 = vsub.f32 %v178, %v279
    %v282 = vlaneseq
    %v283 = vshrl.u32 %v282, 7
    %v284 = vsub.s32 1, %v283
    %v285 = vrot.slane %v276, %v284
    %v286 = vmul.f32 %v255, %v285
    %v287 = vlaneseq
    %v288 = vshrl.u32 %v287, 7
    %v289 = vsub.s32 2, %v288
    %v290 = vrot.slane %v281, %v289
    %v291 = vadd.f32 %v286, %v290
    %s292 = scalar_lea.vmem [#allocation2], 256
    %v293 = vld [vmem:[%s292] sm:$0xff]
    %v294 = vld [vmem:[%s292 + $0x8] sm:$0xff]
    %v295 = vld [vmem:[%s292 + $0x10] sm:$0xff]
    %v296 = vld [vmem:[%s292 + $0x18] sm:$0xff]
    %v297 = vld [vmem:[%s292 + $0x20] sm:$0xff]
    %v298 = vld [vmem:[%s292 + $0x28] sm:$0xff]
    %v299 = vld [vmem:[%s292 + $0x30] sm:$0xff]
    %v300 = vld [vmem:[%s292 + $0x38] sm:$0xff]
    %v301 = vld [vmem:[%s292 + $0x40] sm:$0xff]
    %v302 = vld [vmem:[%s292 + $0x48] sm:$0xff]
    %v303 = vld [vmem:[%s292 + $0x50] sm:$0xff]
    %v304 = vld [vmem:[%s292 + $0x58] sm:$0xff]
    %v305 = vld [vmem:[%s292 + $0x60] sm:$0xff]
    %v306 = vld [vmem:[%s292 + $0x68] sm:$0xff]
    %v307 = vld [vmem:[%s292 + $0x70] sm:$0xff]
    %v308 = vld [vmem:[%s292 + $0x78] sm:$0xff]
    %s309 = scalar_lea.vmem %s2, 8
    %v310 = vld [vmem:[%s309] sm:$0x7]
    %v311 = vlaneseq
    %v312 = vshrl.u32 %v311, 7
    %v313 = vsub.s32 0, %v312
    %v314 = vrot.slane %v310, %v313
    %315 = vmatprep.subr.mxu0 0.0
    %316 = vmatpush1.msra.mxu0 %v293
    %317 = vmatprep.subr.mxu0 0.0
    %318 = vmatpush1.msra.mxu0 %v294
    %319 = vmatprep.subr.mxu0 0.0
    %320 = vmatpush1.msra.mxu0 %v295
    %321 = vmatprep.subr.mxu0 0.0
    %322 = vmatpush1.msra.mxu0 %v296
    %323 = vmatprep.subr.mxu0 0.0
    %324 = vmatpush1.msra.mxu0 %v297
    %325 = vmatprep.subr.mxu0 0.0
    %326 = vmatpush1.msra.mxu0 %v298
    %327 = vmatprep.subr.mxu0 0.0
    %328 = vmatpush1.msra.mxu0 %v299
    %329 = vmatprep.subr.mxu0 0.0
    %330 = vmatpush1.msra.mxu0 %v300
    %331 = vmatprep.subr.mxu0 0.0
    %332 = vmatpush1.msra.mxu0 %v301
    %333 = vmatprep.subr.mxu0 0.0
    %334 = vmatpush1.msra.mxu0 %v302
    %335 = vmatprep.subr.mxu0 0.0
    %336 = vmatpush1.msra.mxu0 %v303
    %337 = vmatprep.subr.mxu0 0.0
    %338 = vmatpush1.msra.mxu0 %v304
    %339 = vmatprep.subr.mxu0 0.0
    %340 = vmatpush1.msra.mxu0 %v305
    %341 = vmatprep.subr.mxu0 0.0
    %342 = vmatpush1.msra.mxu0 %v306
    %343 = vmatprep.subr.mxu0 0.0
    %344 = vmatpush1.msra.mxu0 %v307
    %345 = vmatprep.subr.mxu0 0.0
    %346 = vmatpush1.msra.mxu0 %v308
    %347 = vmatprep.subr.mxu0 0.0
    %348 = vmatpush1.msra.mxu0 0.0
    %349 = vmatprep.subr.mxu0 0.0
    %350 = vmatpush1.msra.mxu0 0.0
    %351 = vmatprep.subr.mxu0 0.0
    %352 = vmatpush1.msra.mxu0 0.0
    %353 = vmatprep.subr.mxu0 0.0
    %354 = vmatpush1.msra.mxu0 0.0
    %355 = vmatprep.subr.mxu0 0.0
    %356 = vmatpush1.msra.mxu0 0.0
    %357 = vmatprep.subr.mxu0 0.0
    %358 = vmatpush1.msra.mxu0 0.0
    %359 = vmatprep.subr.mxu0 0.0
    %360 = vmatpush1.msra.mxu0 0.0
    %361 = vmatprep.subr.mxu0 0.0
    %362 = vmatpush1.msra.mxu0 0.0
    %363 = vmatprep.subr.mxu0 0.0
    %364 = vmatpush1.msra.mxu0 0.0
    %365 = vmatprep.subr.mxu0 0.0
    %366 = vmatpush1.msra.mxu0 0.0
    %367 = vmatprep.subr.mxu0 0.0
    %368 = vmatpush1.msra.mxu0 0.0
    %369 = vmatprep.subr.mxu0 0.0
    %370 = vmatpush1.msra.mxu0 0.0
    %371 = vmatprep.subr.mxu0 0.0
    %372 = vmatpush1.msra.mxu0 0.0
    %373 = vmatprep.subr.mxu0 0.0
    %374 = vmatpush1.msra.mxu0 0.0
    %375 = vmatprep.subr.mxu0 0.0
    %376 = vmatpush1.msra.mxu0 0.0
    %377 = vmatprep.subr.mxu0 0.0
    %378 = vmatpush1.msra.mxu0 0.0
    %379 = vmatprep.mubr.f32.mxu0 0.0
    %380 = vmatmul.mubr.f32.gmra.mrb[0].mxu0 %v291
    %v381 = vpop.f32.mrb[0].mxu0
    %v382 = vadd.f32 %v314, %v381
    %v383 = vpop.f32.mrb[0].mxu0
    %384 = vdwg.mxu0
    %vm385 = vcmp.gt.f32.partialorder %v382, 0.0
    %v386 = vmul.f32 %v382, 0.01
    %v387 = vsel %vm385, %v382, %v386
    %v388 = vrot.slane %v387, 4
    %v389 = vadd.f32 %v387, %v388
    %v390 = vrot.slane %v389, 2
    %v391 = vadd.f32 %v389, %v390
    %v392 = vrot.slane %v391, 1
    %v393 = vadd.f32 %v391, %v392
    %v394 = vmul.f32 %v393, 0.125
    %v395 = vmul.f32 %v387, %v387
    %v396 = vrot.slane %v395, 4
    %v397 = vadd.f32 %v395, %v396
    %v398 = vrot.slane %v397, 2
    %v399 = vadd.f32 %v397, %v398
    %v400 = vrot.slane %v399, 1
    %v401 = vadd.f32 %v399, %v400
    %v402 = vmul.f32 %v401, 0.125
    %v403 = vmul.f32 %v394, %v394
    %v404 = vsub.f32 %v402, %v403
    %v405 = vmax.f32 %v404, 0.0
    %v406 = vadd.f32 %v405, 1e-05
    %v407 = vrsqrt.pop %v406
    %v408 = vmul.f32 %v310, %v407
    %v409 = vmul.f32 %v394, %v408
    %v411 = vrot.slane %v409, 7
    %v413 = vsub.f32 %v310, %v411
    %v414 = vlaneseq
    %v415 = vshrl.u32 %v414, 7
    %v416 = vsub.s32 1, %v415
    %v417 = vrot.slane %v408, %v416
    %v418 = vmul.f32 %v387, %v417
    %v419 = vlaneseq
    %v420 = vshrl.u32 %v419, 7
    %v421 = vsub.s32 2, %v420
    %v422 = vrot.slane %v413, %v421
    %v423 = vadd.f32 %v418, %v422
    %s424 = scalar_lea.vmem [#allocation2], 384
    %v425 = vld [vmem:[%s424] sm:$0xff]
    %v426 = vld [vmem:[%s424 + $0x8] sm:$0xff]
    %v427 = vld [vmem:[%s424 + $0x10] sm:$0xff]
    %v428 = vld [vmem:[%s424 + $0x18] sm:$0xff]
    %v429 = vld [vmem:[%s424 + $0x20] sm:$0xff]
    %v430 = vld [vmem:[%s424 + $0x28] sm:$0xff]
    %v431 = vld [vmem:[%s424 + $0x30] sm:$0xff]
    %v432 = vld [vmem:[%s424 + $0x38] sm:$0xff]
    %v433 = vld [vmem:[%s424 + $0x40] sm:$0xff]
    %v434 = vld [vmem:[%s424 + $0x48] sm:$0xff]
    %v435 = vld [vmem:[%s424 + $0x50] sm:$0xff]
    %v436 = vld [vmem:[%s424 + $0x58] sm:$0xff]
    %v437 = vld [vmem:[%s424 + $0x60] sm:$0xff]
    %v438 = vld [vmem:[%s424 + $0x68] sm:$0xff]
    %v439 = vld [vmem:[%s424 + $0x70] sm:$0xff]
    %v440 = vld [vmem:[%s424 + $0x78] sm:$0xff]
    %s441 = scalar_lea.vmem %s2, 12
    %v442 = vld [vmem:[%s441] sm:$0x7]
    %v443 = vlaneseq
    %v444 = vshrl.u32 %v443, 7
    %v445 = vsub.s32 0, %v444
    %v446 = vrot.slane %v442, %v445
    %447 = vmatprep.subr.mxu0 0.0
    %448 = vmatpush1.msra.mxu0 %v425
    %449 = vmatprep.subr.mxu0 0.0
    %450 = vmatpush1.msra.mxu0 %v426
    %451 = vmatprep.subr.mxu0 0.0
    %452 = vmatpush1.msra.mxu0 %v427
    %453 = vmatprep.subr.mxu0 0.0
    %454 = vmatpush1.msra.mxu0 %v428
    %455 = vmatprep.subr.mxu0 0.0
    %456 = vmatpush1.msra.mxu0 %v429
    %457 = vmatprep.subr.mxu0 0.0
    %458 = vmatpush1.msra.mxu0 %v430
    %459 = vmatprep.subr.mxu0 0.0
    %460 = vmatpush1.msra.mxu0 %v431
    %461 = vmatprep.subr.mxu0 0.0
    %462 = vmatpush1.msra.mxu0 %v432
    %463 = vmatprep.subr.mxu0 0.0
    %464 = vmatpush1.msra.mxu0 %v433
    %465 = vmatprep.subr.mxu0 0.0
    %466 = vmatpush1.msra.mxu0 %v434
    %467 = vmatprep.subr.mxu0 0.0
    %468 = vmatpush1.msra.mxu0 %v435
    %469 = vmatprep.subr.mxu0 0.0
    %470 = vmatpush1.msra.mxu0 %v436
    %471 = vmatprep.subr.mxu0 0.0
    %472 = vmatpush1.msra.mxu0 %v437
    %473 = vmatprep.subr.mxu0 0.0
    %474 = vmatpush1.msra.mxu0 %v438
    %475 = vmatprep.subr.mxu0 0.0
    %476 = vmatpush1.msra.mxu0 %v439
    %477 = vmatprep.subr.mxu0 0.0
    %478 = vmatpush1.msra.mxu0 %v440
    %479 = vmatprep.subr.mxu0 0.0
    %480 = vmatpush1.msra.mxu0 0.0
    %481 = vmatprep.subr.mxu0 0.0
    %482 = vmatpush1.msra.mxu0 0.0
    %483 = vmatprep.subr.mxu0 0.0
    %484 = vmatpush1.msra.mxu0 0.0
    %485 = vmatprep.subr.mxu0 0.0
    %486 = vmatpush1.msra.mxu0 0.0
    %487 = vmatprep.subr.mxu0 0.0
    %488 = vmatpush1.msra.mxu0 0.0
    %489 = vmatprep.subr.mxu0 0.0
    %490 = vmatpush1.msra.mxu0 0.0
    %491 = vmatprep.subr.mxu0 0.0
    %492 = vmatpush1.msra.mxu0 0.0
    %493 = vmatprep.subr.mxu0 0.0
    %494 = vmatpush1.msra.mxu0 0.0
    %495 = vmatprep.subr.mxu0 0.0
    %496 = vmatpush1.msra.mxu0 0.0
    %497 = vmatprep.subr.mxu0 0.0
    %498 = vmatpush1.msra.mxu0 0.0
    %499 = vmatprep.subr.mxu0 0.0
    %500 = vmatpush1.msra.mxu0 0.0
    %501 = vmatprep.subr.mxu0 0.0
    %502 = vmatpush1.msra.mxu0 0.0
    %503 = vmatprep.subr.mxu0 0.0
    %504 = vmatpush1.msra.mxu0 0.0
    %505 = vmatprep.subr.mxu0 0.0
    %506 = vmatpush1.msra.mxu0 0.0
    %507 = vmatprep.subr.mxu0 0.0
    %508 = vmatpush1.msra.mxu0 0.0
    %509 = vmatprep.subr.mxu0 0.0
    %510 = vmatpush1.msra.mxu0 0.0
    %511 = vmatprep.mubr.f32.mxu0 0.0
    %512 = vmatmul.mubr.f32.gmra.mrb[0].mxu0 %v423
    %v513 = vpop.f32.mrb[0].mxu0
    %v514 = vadd.f32 %v446, %v513
    %v515 = vpop.f32.mrb[0].mxu0
    %516 = vdwg.mxu0
    %vm517 = vcmp.gt.f32.partialorder %v514, 0.0
    %v518 = vmul.f32 %v514, 0.01
    %v519 = vsel %vm517, %v514, %v518
    %v520 = vrot.slane %v519, 4
    %v521 = vadd.f32 %v519, %v520
    %v522 = vrot.slane %v521, 2
    %v523 = vadd.f32 %v521, %v522
    %v524 = vrot.slane %v523, 1
    %v525 = vadd.f32 %v523, %v524
    %v526 = vmul.f32 %v525, 0.125
    %v527 = vmul.f32 %v519, %v519
    %v528 = vrot.slane %v527, 4
    %v529 = vadd.f32 %v527, %v528
    %v530 = vrot.slane %v529, 2
    %v531 = vadd.f32 %v529, %v530
    %v532 = vrot.slane %v531, 1
    %v533 = vadd.f32 %v531, %v532
    %v534 = vmul.f32 %v533, 0.125
    %v535 = vmul.f32 %v526, %v526
    %v536 = vsub.f32 %v534, %v535
    %v537 = vmax.f32 %v536, 0.0
    %v538 = vadd.f32 %v537, 1e-05
    %v539 = vrsqrt.pop %v538
    %v540 = vmul.f32 %v442, %v539
    %v541 = vmul.f32 %v526, %v540
    %v543 = vrot.slane %v541, 7
    %v545 = vsub.f32 %v442, %v543
    %v546 = vlaneseq
    %v547 = vshrl.u32 %v546, 7
    %v548 = vsub.s32 1, %v547
    %v549 = vrot.slane %v540, %v548
    %v550 = vmul.f32 %v519, %v549
    %v551 = vlaneseq
    %v552 = vshrl.u32 %v551, 7
    %v553 = vsub.s32 2, %v552
    %v554 = vrot.slane %v545, %v553
    %v555 = vadd.f32 %v550, %v554
    %s556 = scalar_lea.vmem [#allocation2], 512
    %v557 = vld [vmem:[%s556] sm:$0xff]
    %v558 = vld [vmem:[%s556 + $0x8] sm:$0xff]
    %v559 = vld [vmem:[%s556 + $0x10] sm:$0xff]
    %v560 = vld [vmem:[%s556 + $0x18] sm:$0xff]
    %v561 = vld [vmem:[%s556 + $0x20] sm:$0xff]
    %v562 = vld [vmem:[%s556 + $0x28] sm:$0xff]
    %v563 = vld [vmem:[%s556 + $0x30] sm:$0xff]
    %v564 = vld [vmem:[%s556 + $0x38] sm:$0xff]
    %v565 = vld [vmem:[%s556 + $0x40] sm:$0xff]
    %v566 = vld [vmem:[%s556 + $0x48] sm:$0xff]
    %v567 = vld [vmem:[%s556 + $0x50] sm:$0xff]
    %v568 = vld [vmem:[%s556 + $0x58] sm:$0xff]
    %v569 = vld [vmem:[%s556 + $0x60] sm:$0xff]
    %v570 = vld [vmem:[%s556 + $0x68] sm:$0xff]
    %v571 = vld [vmem:[%s556 + $0x70] sm:$0xff]
    %v572 = vld [vmem:[%s556 + $0x78] sm:$0xff]
    %s573 = scalar_lea.vmem %s2, 16
    %v574 = vld [vmem:[%s573] sm:$0x7]
    %v575 = vlaneseq
    %v576 = vshrl.u32 %v575, 7
    %v577 = vsub.s32 0, %v576
    %v578 = vrot.slane %v574, %v577
    %579 = vmatprep.subr.mxu0 0.0
    %580 = vmatpush1.msra.mxu0 %v557
    %581 = vmatprep.subr.mxu0 0.0
    %582 = vmatpush1.msra.mxu0 %v558
    %583 = vmatprep.subr.mxu0 0.0
    %584 = vmatpush1.msra.mxu0 %v559
    %585 = vmatprep.subr.mxu0 0.0
    %586 = vmatpush1.msra.mxu0 %v560
    %587 = vmatprep.subr.mxu0 0.0
    %588 = vmatpush1.msra.mxu0 %v561
    %589 = vmatprep.subr.mxu0 0.0
    %590 = vmatpush1.msra.mxu0 %v562
    %591 = vmatprep.subr.mxu0 0.0
    %592 = vmatpush1.msra.mxu0 %v563
    %593 = vmatprep.subr.mxu0 0.0
    %594 = vmatpush1.msra.mxu0 %v564
    %595 = vmatprep.subr.mxu0 0.0
    %596 = vmatpush1.msra.mxu0 %v565
    %597 = vmatprep.subr.mxu0 0.0
    %598 = vmatpush1.msra.mxu0 %v566
    %599 = vmatprep.subr.mxu0 0.0
    %600 = vmatpush1.msra.mxu0 %v567
    %601 = vmatprep.subr.mxu0 0.0
    %602 = vmatpush1.msra.mxu0 %v568
    %603 = vmatprep.subr.mxu0 0.0
    %604 = vmatpush1.msra.mxu0 %v569
    %605 = vmatprep.subr.mxu0 0.0
    %606 = vmatpush1.msra.mxu0 %v570
    %607 = vmatprep.subr.mxu0 0.0
    %608 = vmatpush1.msra.mxu0 %v571
    %609 = vmatprep.subr.mxu0 0.0
    %610 = vmatpush1.msra.mxu0 %v572
    %611 = vmatprep.subr.mxu0 0.0
    %612 = vmatpush1.msra.mxu0 0.0
    %613 = vmatprep.subr.mxu0 0.0
    %614 = vmatpush1.msra.mxu0 0.0
    %615 = vmatprep.subr.mxu0 0.0
    %616 = vmatpush1.msra.mxu0 0.0
    %617 = vmatprep.subr.mxu0 0.0
    %618 = vmatpush1.msra.mxu0 0.0
    %619 = vmatprep.subr.mxu0 0.0
    %620 = vmatpush1.msra.mxu0 0.0
    %621 = vmatprep.subr.mxu0 0.0
    %622 = vmatpush1.msra.mxu0 0.0
    %623 = vmatprep.subr.mxu0 0.0
    %624 = vmatpush1.msra.mxu0 0.0
    %625 = vmatprep.subr.mxu0 0.0
    %626 = vmatpush1.msra.mxu0 0.0
    %627 = vmatprep.subr.mxu0 0.0
    %628 = vmatpush1.msra.mxu0 0.0
    %629 = vmatprep.subr.mxu0 0.0
    %630 = vmatpush1.msra.mxu0 0.0
    %631 = vmatprep.subr.mxu0 0.0
    %632 = vmatpush1.msra.mxu0 0.0
    %633 = vmatprep.subr.mxu0 0.0
    %634 = vmatpush1.msra.mxu0 0.0
    %635 = vmatprep.subr.mxu0 0.0
    %636 = vmatpush1.msra.mxu0 0.0
    %637 = vmatprep.subr.mxu0 0.0
    %638 = vmatpush1.msra.mxu0 0.0
    %639 = vmatprep.subr.mxu0 0.0
    %640 = vmatpush1.msra.mxu0 0.0
    %641 = vmatprep.subr.mxu0 0.0
    %642 = vmatpush1.msra.mxu0 0.0
    %643 = vmatprep.mubr.f32.mxu0 0.0
    %644 = vmatmul.mubr.f32.gmra.mrb[0].mxu0 %v555
    %v645 = vpop.f32.mrb[0].mxu0
    %v646 = vadd.f32 %v578, %v645
    %v647 = vpop.f32.mrb[0].mxu0
    %648 = vdwg.mxu0
    %vm649 = vcmp.gt.f32.partialorder %v646, 0.0
    %v650 = vmul.f32 %v646, 0.01
    %v651 = vsel %vm649, %v646, %v650
    %v652 = vrot.slane %v651, 4
    %v653 = vadd.f32 %v651, %v652
    %v654 = vrot.slane %v653, 2
    %v655 = vadd.f32 %v653, %v654
    %v656 = vrot.slane %v655, 1
    %v657 = vadd.f32 %v655, %v656
    %v658 = vmul.f32 %v657, 0.125
    %v659 = vmul.f32 %v651, %v651
    %v660 = vrot.slane %v659, 4
    %v661 = vadd.f32 %v659, %v660
    %v662 = vrot.slane %v661, 2
    %v663 = vadd.f32 %v661, %v662
    %v664 = vrot.slane %v663, 1
    %v665 = vadd.f32 %v663, %v664
    %v666 = vmul.f32 %v665, 0.125
    %v667 = vmul.f32 %v658, %v658
    %v668 = vsub.f32 %v666, %v667
    %v669 = vmax.f32 %v668, 0.0
    %v670 = vadd.f32 %v669, 1e-05
    %v671 = vrsqrt.pop %v670
    %v672 = vmul.f32 %v574, %v671
    %v673 = vmul.f32 %v658, %v672
    %v675 = vrot.slane %v673, 7
    %v677 = vsub.f32 %v574, %v675
    %v678 = vlaneseq
    %v679 = vshrl.u32 %v678, 7
    %v680 = vsub.s32 1, %v679
    %v681 = vrot.slane %v672, %v680
    %v682 = vmul.f32 %v651, %v681
    %v683 = vlaneseq
    %v684 = vshrl.u32 %v683, 7
    %v685 = vsub.s32 2, %v684
    %v686 = vrot.slane %v677, %v685
    %v687 = vadd.f32 %v682, %v686
    %s688 = scalar_lea.vmem [#allocation2], 640
    %v689 = vld [vmem:[%s688] sm:$0xff]
    %v690 = vld [vmem:[%s688 + $0x8] sm:$0xff]
    %v691 = vld [vmem:[%s688 + $0x10] sm:$0xff]
    %v692 = vld [vmem:[%s688 + $0x18] sm:$0xff]
    %v693 = vld [vmem:[%s688 + $0x20] sm:$0xff]
    %v694 = vld [vmem:[%s688 + $0x28] sm:$0xff]
    %v695 = vld [vmem:[%s688 + $0x30] sm:$0xff]
    %v696 = vld [vmem:[%s688 + $0x38] sm:$0xff]
    %v697 = vld [vmem:[%s688 + $0x40] sm:$0xff]
    %v698 = vld [vmem:[%s688 + $0x48] sm:$0xff]
    %v699 = vld [vmem:[%s688 + $0x50] sm:$0xff]
    %v700 = vld [vmem:[%s688 + $0x58] sm:$0xff]
    %v701 = vld [vmem:[%s688 + $0x60] sm:$0xff]
    %v702 = vld [vmem:[%s688 + $0x68] sm:$0xff]
    %v703 = vld [vmem:[%s688 + $0x70] sm:$0xff]
    %v704 = vld [vmem:[%s688 + $0x78] sm:$0xff]
    %s705 = scalar_lea.vmem %s2, 20
    %v706 = vld [vmem:[%s705] sm:$0x7]
    %v707 = vlaneseq
    %v708 = vshrl.u32 %v707, 7
    %v709 = vsub.s32 0, %v708
    %v710 = vrot.slane %v706, %v709
    %711 = vmatprep.subr.mxu0 0.0
    %712 = vmatpush1.msra.mxu0 %v689
    %713 = vmatprep.subr.mxu0 0.0
    %714 = vmatpush1.msra.mxu0 %v690
    %715 = vmatprep.subr.mxu0 0.0
    %716 = vmatpush1.msra.mxu0 %v691
    %717 = vmatprep.subr.mxu0 0.0
    %718 = vmatpush1.msra.mxu0 %v692
    %719 = vmatprep.subr.mxu0 0.0
    %720 = vmatpush1.msra.mxu0 %v693
    %721 = vmatprep.subr.mxu0 0.0
    %722 = vmatpush1.msra.mxu0 %v694
    %723 = vmatprep.subr.mxu0 0.0
    %724 = vmatpush1.msra.mxu0 %v695
    %725 = vmatprep.subr.mxu0 0.0
    %726 = vmatpush1.msra.mxu0 %v696
    %727 = vmatprep.subr.mxu0 0.0
    %728 = vmatpush1.msra.mxu0 %v697
    %729 = vmatprep.subr.mxu0 0.0
    %730 = vmatpush1.msra.mxu0 %v698
    %731 = vmatprep.subr.mxu0 0.0
    %732 = vmatpush1.msra.mxu0 %v699
    %733 = vmatprep.subr.mxu0 0.0
    %734 = vmatpush1.msra.mxu0 %v700
    %735 = vmatprep.subr.mxu0 0.0
    %736 = vmatpush1.msra.mxu0 %v701
    %737 = vmatprep.subr.mxu0 0.0
    %738 = vmatpush1.msra.mxu0 %v702
    %739 = vmatprep.subr.mxu0 0.0
    %740 = vmatpush1.msra.mxu0 %v703
    %741 = vmatprep.subr.mxu0 0.0
    %742 = vmatpush1.msra.mxu0 %v704
    %743 = vmatprep.subr.mxu0 0.0
    %744 = vmatpush1.msra.mxu0 0.0
    %745 = vmatprep.subr.mxu0 0.0
    %746 = vmatpush1.msra.mxu0 0.0
    %747 = vmatprep.subr.mxu0 0.0
    %748 = vmatpush1.msra.mxu0 0.0
    %749 = vmatprep.subr.mxu0 0.0
    %750 = vmatpush1.msra.mxu0 0.0
    %751 = vmatprep.subr.mxu0 0.0
    %752 = vmatpush1.msra.mxu0 0.0
    %753 = vmatprep.subr.mxu0 0.0
    %754 = vmatpush1.msra.mxu0 0.0
    %755 = vmatprep.subr.mxu0 0.0
    %756 = vmatpush1.msra.mxu0 0.0
    %757 = vmatprep.subr.mxu0 0.0
    %758 = vmatpush1.msra.mxu0 0.0
    %759 = vmatprep.subr.mxu0 0.0
    %760 = vmatpush1.msra.mxu0 0.0
    %761 = vmatprep.subr.mxu0 0.0
    %762 = vmatpush1.msra.mxu0 0.0
    %763 = vmatprep.subr.mxu0 0.0
    %764 = vmatpush1.msra.mxu0 0.0
    %765 = vmatprep.subr.mxu0 0.0
    %766 = vmatpush1.msra.mxu0 0.0
    %767 = vmatprep.subr.mxu0 0.0
    %768 = vmatpush1.msra.mxu0 0.0
    %769 = vmatprep.subr.mxu0 0.0
    %770 = vmatpush1.msra.mxu0 0.0
    %771 = vmatprep.subr.mxu0 0.0
    %772 = vmatpush1.msra.mxu0 0.0
    %773 = vmatprep.subr.mxu0 0.0
    %774 = vmatpush1.msra.mxu0 0.0
    %775 = vmatprep.mubr.f32.mxu0 0.0
    %776 = vmatmul.mubr.f32.gmra.mrb[0].mxu0 %v687
    %v777 = vpop.f32.mrb[0].mxu0
    %v778 = vadd.f32 %v710, %v777
    %v779 = vpop.f32.mrb[0].mxu0
    %780 = vdwg.mxu0
    %vm781 = vcmp.gt.f32.partialorder %v778, 0.0
    %v782 = vmul.f32 %v778, 0.01
    %v783 = vsel %vm781, %v778, %v782
    %v784 = vrot.slane %v783, 4
    %v785 = vadd.f32 %v783, %v784
    %v786 = vrot.slane %v785, 2
    %v787 = vadd.f32 %v785, %v786
    %v788 = vrot.slane %v787, 1
    %v789 = vadd.f32 %v787, %v788
    %v790 = vmul.f32 %v789, 0.125
    %v791 = vmul.f32 %v783, %v783
    %v792 = vrot.slane %v791, 4
    %v793 = vadd.f32 %v791, %v792
    %v794 = vrot.slane %v793, 2
    %v795 = vadd.f32 %v793, %v794
    %v796 = vrot.slane %v795, 1
    %v797 = vadd.f32 %v795, %v796
    %v798 = vmul.f32 %v797, 0.125
    %v799 = vmul.f32 %v790, %v790
    %v800 = vsub.f32 %v798, %v799
    %v801 = vmax.f32 %v800, 0.0
    %v802 = vadd.f32 %v801, 1e-05
    %v803 = vrsqrt.pop %v802
    %v804 = vmul.f32 %v706, %v803
    %v805 = vmul.f32 %v790, %v804
    %v807 = vrot.slane %v805, 7
    %v809 = vsub.f32 %v706, %v807
    %v810 = vlaneseq
    %v811 = vshrl.u32 %v810, 7
    %v812 = vsub.s32 1, %v811
    %v813 = vrot.slane %v804, %v812
    %v814 = vmul.f32 %v783, %v813
    %v815 = vlaneseq
    %v816 = vshrl.u32 %v815, 7
    %v817 = vsub.s32 2, %v816
    %v818 = vrot.slane %v809, %v817
    %v819 = vadd.f32 %v814, %v818
    %s820 = scalar_lea.vmem [#allocation2], 768
    %v821 = vld [vmem:[%s820] sm:$0xff]
    %v822 = vld [vmem:[%s820 + $0x8] sm:$0xff]
    %v823 = vld [vmem:[%s820 + $0x10] sm:$0xff]
    %v824 = vld [vmem:[%s820 + $0x18] sm:$0xff]
    %v825 = vld [vmem:[%s820 + $0x20] sm:$0xff]
    %v826 = vld [vmem:[%s820 + $0x28] sm:$0xff]
    %v827 = vld [vmem:[%s820 + $0x30] sm:$0xff]
    %v828 = vld [vmem:[%s820 + $0x38] sm:$0xff]
    %v829 = vld [vmem:[%s820 + $0x40] sm:$0xff]
    %v830 = vld [vmem:[%s820 + $0x48] sm:$0xff]
    %v831 = vld [vmem:[%s820 + $0x50] sm:$0xff]
    %v832 = vld [vmem:[%s820 + $0x58] sm:$0xff]
    %v833 = vld [vmem:[%s820 + $0x60] sm:$0xff]
    %v834 = vld [vmem:[%s820 + $0x68] sm:$0xff]
    %v835 = vld [vmem:[%s820 + $0x70] sm:$0xff]
    %v836 = vld [vmem:[%s820 + $0x78] sm:$0xff]
    %s837 = scalar_lea.vmem %s2, 24
    %v838 = vld [vmem:[%s837] sm:$0x7]
    %v839 = vlaneseq
    %v840 = vshrl.u32 %v839, 7
    %v841 = vsub.s32 0, %v840
    %v842 = vrot.slane %v838, %v841
    %843 = vmatprep.subr.mxu0 0.0
    %844 = vmatpush1.msra.mxu0 %v821
    %845 = vmatprep.subr.mxu0 0.0
    %846 = vmatpush1.msra.mxu0 %v822
    %847 = vmatprep.subr.mxu0 0.0
    %848 = vmatpush1.msra.mxu0 %v823
    %849 = vmatprep.subr.mxu0 0.0
    %850 = vmatpush1.msra.mxu0 %v824
    %851 = vmatprep.subr.mxu0 0.0
    %852 = vmatpush1.msra.mxu0 %v825
    %853 = vmatprep.subr.mxu0 0.0
    %854 = vmatpush1.msra.mxu0 %v826
    %855 = vmatprep.subr.mxu0 0.0
    %856 = vmatpush1.msra.mxu0 %v827
    %857 = vmatprep.subr.mxu0 0.0
    %858 = vmatpush1.msra.mxu0 %v828
    %859 = vmatprep.subr.mxu0 0.0
    %860 = vmatpush1.msra.mxu0 %v829
    %861 = vmatprep.subr.mxu0 0.0
    %862 = vmatpush1.msra.mxu0 %v830
    %863 = vmatprep.subr.mxu0 0.0
    %864 = vmatpush1.msra.mxu0 %v831
    %865 = vmatprep.subr.mxu0 0.0
    %866 = vmatpush1.msra.mxu0 %v832
    %867 = vmatprep.subr.mxu0 0.0
    %868 = vmatpush1.msra.mxu0 %v833
    %869 = vmatprep.subr.mxu0 0.0
    %870 = vmatpush1.msra.mxu0 %v834
    %871 = vmatprep.subr.mxu0 0.0
    %872 = vmatpush1.msra.mxu0 %v835
    %873 = vmatprep.subr.mxu0 0.0
    %874 = vmatpush1.msra.mxu0 %v836
    %875 = vmatprep.subr.mxu0 0.0
    %876 = vmatpush1.msra.mxu0 0.0
    %877 = vmatprep.subr.mxu0 0.0
    %878 = vmatpush1.msra.mxu0 0.0
    %879 = vmatprep.subr.mxu0 0.0
    %880 = vmatpush1.msra.mxu0 0.0
    %881 = vmatprep.subr.mxu0 0.0
    %882 = vmatpush1.msra.mxu0 0.0
    %883 = vmatprep.subr.mxu0 0.0
    %884 = vmatpush1.msra.mxu0 0.0
    %885 = vmatprep.subr.mxu0 0.0
    %886 = vmatpush1.msra.mxu0 0.0
    %887 = vmatprep.subr.mxu0 0.0
    %888 = vmatpush1.msra.mxu0 0.0
    %889 = vmatprep.subr.mxu0 0.0
    %890 = vmatpush1.msra.mxu0 0.0
    %891 = vmatprep.subr.mxu0 0.0
    %892 = vmatpush1.msra.mxu0 0.0
    %893 = vmatprep.subr.mxu0 0.0
    %894 = vmatpush1.msra.mxu0 0.0
    %895 = vmatprep.subr.mxu0 0.0
    %896 = vmatpush1.msra.mxu0 0.0
    %897 = vmatprep.subr.mxu0 0.0
    %898 = vmatpush1.msra.mxu0 0.0
    %899 = vmatprep.subr.mxu0 0.0
    %900 = vmatpush1.msra.mxu0 0.0
    %901 = vmatprep.subr.mxu0 0.0
    %902 = vmatpush1.msra.mxu0 0.0
    %903 = vmatprep.subr.mxu0 0.0
    %904 = vmatpush1.msra.mxu0 0.0
    %905 = vmatprep.subr.mxu0 0.0
    %906 = vmatpush1.msra.mxu0 0.0
    %907 = vmatprep.mubr.f32.mxu0 0.0
    %908 = vmatmul.mubr.f32.gmra.mrb[0].mxu0 %v819
    %v909 = vpop.f32.mrb[0].mxu0
    %v910 = vadd.f32 %v842, %v909
    %v911 = vpop.f32.mrb[0].mxu0
    %912 = vdwg.mxu0
    %vm913 = vcmp.gt.f32.partialorder %v910, 0.0
    %v914 = vmul.f32 %v910, 0.01
    %v915 = vsel %vm913, %v910, %v914
    %v916 = vrot.slane %v915, 4
    %v917 = vadd.f32 %v915, %v916
    %v918 = vrot.slane %v917, 2
    %v919 = vadd.f32 %v917, %v918
    %v920 = vrot.slane %v919, 1
    %v921 = vadd.f32 %v919, %v920
    %v922 = vmul.f32 %v921, 0.125
    %v923 = vmul.f32 %v915, %v915
    %v924 = vrot.slane %v923, 4
    %v925 = vadd.f32 %v923, %v924
    %v926 = vrot.slane %v925, 2
    %v927 = vadd.f32 %v925, %v926
    %v928 = vrot.slane %v927, 1
    %v929 = vadd.f32 %v927, %v928
    %v930 = vmul.f32 %v929, 0.125
    %v931 = vmul.f32 %v922, %v922
    %v932 = vsub.f32 %v930, %v931
    %v933 = vmax.f32 %v932, 0.0
    %v934 = vadd.f32 %v933, 1e-05
    %v935 = vrsqrt.pop %v934
    %v936 = vmul.f32 %v838, %v935
    %v937 = vmul.f32 %v922, %v936
    %v939 = vrot.slane %v937, 7
    %v941 = vsub.f32 %v838, %v939
    %v942 = vlaneseq
    %v943 = vshrl.u32 %v942, 7
    %v944 = vsub.s32 1, %v943
    %v945 = vrot.slane %v936, %v944
    %v946 = vmul.f32 %v915, %v945
    %v947 = vlaneseq
    %v948 = vshrl.u32 %v947, 7
    %v949 = vsub.s32 2, %v948
    %v950 = vrot.slane %v941, %v949
    %v951 = vadd.f32 %v946, %v950
    %s952 = scalar_lea.vmem [#allocation2], 896
    %v953 = vld [vmem:[%s952] sm:$0xff]
    %v954 = vld [vmem:[%s952 + $0x8] sm:$0xff]
    %v955 = vld [vmem:[%s952 + $0x10] sm:$0xff]
    %v956 = vld [vmem:[%s952 + $0x18] sm:$0xff]
    %v957 = vld [vmem:[%s952 + $0x20] sm:$0xff]
    %v958 = vld [vmem:[%s952 + $0x28] sm:$0xff]
    %v959 = vld [vmem:[%s952 + $0x30] sm:$0xff]
    %v960 = vld [vmem:[%s952 + $0x38] sm:$0xff]
    %v961 = vld [vmem:[%s952 + $0x40] sm:$0xff]
    %v962 = vld [vmem:[%s952 + $0x48] sm:$0xff]
    %v963 = vld [vmem:[%s952 + $0x50] sm:$0xff]
    %v964 = vld [vmem:[%s952 + $0x58] sm:$0xff]
    %v965 = vld [vmem:[%s952 + $0x60] sm:$0xff]
    %v966 = vld [vmem:[%s952 + $0x68] sm:$0xff]
    %v967 = vld [vmem:[%s952 + $0x70] sm:$0xff]
    %v968 = vld [vmem:[%s952 + $0x78] sm:$0xff]
    %s969 = scalar_lea.vmem %s2, 28
    %v970 = vld [vmem:[%s969] sm:$0x7]
    %v971 = vlaneseq
    %v972 = vshrl.u32 %v971, 7
    %v973 = vsub.s32 0, %v972
    %v974 = vrot.slane %v970, %v973
    %975 = vmatprep.subr.mxu0 0.0
    %976 = vmatpush1.msra.mxu0 %v953
    %977 = vmatprep.subr.mxu0 0.0
    %978 = vmatpush1.msra.mxu0 %v954
    %979 = vmatprep.subr.mxu0 0.0
    %980 = vmatpush1.msra.mxu0 %v955
    %981 = vmatprep.subr.mxu0 0.0
    %982 = vmatpush1.msra.mxu0 %v956
    %983 = vmatprep.subr.mxu0 0.0
    %984 = vmatpush1.msra.mxu0 %v957
    %985 = vmatprep.subr.mxu0 0.0
    %986 = vmatpush1.msra.mxu0 %v958
    %987 = vmatprep.subr.mxu0 0.0
    %988 = vmatpush1.msra.mxu0 %v959
    %989 = vmatprep.subr.mxu0 0.0
    %990 = vmatpush1.msra.mxu0 %v960
    %991 = vmatprep.subr.mxu0 0.0
    %992 = vmatpush1.msra.mxu0 %v961
    %993 = vmatprep.subr.mxu0 0.0
    %994 = vmatpush1.msra.mxu0 %v962
    %995 = vmatprep.subr.mxu0 0.0
    %996 = vmatpush1.msra.mxu0 %v963
    %997 = vmatprep.subr.mxu0 0.0
    %998 = vmatpush1.msra.mxu0 %v964
    %999 = vmatprep.subr.mxu0 0.0
    %1000 = vmatpush1.msra.mxu0 %v965
    %1001 = vmatprep.subr.mxu0 0.0
    %1002 = vmatpush1.msra.mxu0 %v966
    %1003 = vmatprep.subr.mxu0 0.0
    %1004 = vmatpush1.msra.mxu0 %v967
    %1005 = vmatprep.subr.mxu0 0.0
    %1006 = vmatpush1.msra.mxu0 %v968
    %1007 = vmatprep.subr.mxu0 0.0
    %1008 = vmatpush1.msra.mxu0 0.0
    %1009 = vmatprep.subr.mxu0 0.0
    %1010 = vmatpush1.msra.mxu0 0.0
    %1011 = vmatprep.subr.mxu0 0.0
    %1012 = vmatpush1.msra.mxu0 0.0
    %1013 = vmatprep.subr.mxu0 0.0
    %1014 = vmatpush1.msra.mxu0 0.0
    %1015 = vmatprep.subr.mxu0 0.0
    %1016 = vmatpush1.msra.mxu0 0.0
    %1017 = vmatprep.subr.mxu0 0.0
    %1018 = vmatpush1.msra.mxu0 0.0
    %1019 = vmatprep.subr.mxu0 0.0
    %1020 = vmatpush1.msra.mxu0 0.0
    %1021 = vmatprep.subr.mxu0 0.0
    %1022 = vmatpush1.msra.mxu0 0.0
    %1023 = vmatprep.subr.mxu0 0.0
    %1024 = vmatpush1.msra.mxu0 0.0
    %1025 = vmatprep.subr.mxu0 0.0
    %1026 = vmatpush1.msra.mxu0 0.0
    %1027 = vmatprep.subr.mxu0 0.0
    %1028 = vmatpush1.msra.mxu0 0.0
    %1029 = vmatprep.subr.mxu0 0.0
    %1030 = vmatpush1.msra.mxu0 0.0
    %1031 = vmatprep.subr.mxu0 0.0
    %1032 = vmatpush1.msra.mxu0 0.0
    %1033 = vmatprep.subr.mxu0 0.0
    %1034 = vmatpush1.msra.mxu0 0.0
    %1035 = vmatprep.subr.mxu0 0.0
    %1036 = vmatpush1.msra.mxu0 0.0
    %1037 = vmatprep.subr.mxu0 0.0
    %1038 = vmatpush1.msra.mxu0 0.0
    %1039 = vmatprep.mubr.f32.mxu0 0.0
    %1040 = vmatmul.mubr.f32.gmra.mrb[0].mxu0 %v951
    %v1041 = vpop.f32.mrb[0].mxu0
    %v1042 = vadd.f32 %v974, %v1041
    %v1043 = vpop.f32.mrb[0].mxu0
    %1044 = vdwg.mxu0
    %1045 = vst [vmem:[#allocation5] sm:$0xff] %v1042
    // Predicated region
    $region18: #{tpu_custom_call.1} parent=1 // pred_check
      _
    $region19: #{tpu_custom_call.1} parent=1 // pred_check_branch
      %1047 = sbr.rel (0) target = $region21
    $region20: #{tpu_custom_call.1} parent=1 // pred_region
      %s1049 = ssub.s32 128, 128
      %1050 = vsyncadd [#allocation4], %s1049
      %s1052 = sshll.u32 [#allocation5], 4
      %s1053 = int_to_ptr.vmem [resolvable:$true] %s1052
      %1055 = dma.vmem_to_hbm [thread:$0]  %s1053, 128, %s3, [#allocation4]
    $region21: #{tpu_custom_call.1} parent=1 // pred_fallthru
      _
    // Predicated region
    $region22: #{tpu_custom_call.1} parent=1 // pred_check
      _
    $region23: #{tpu_custom_call.1} parent=1 // pred_check_branch
      %1057 = sbr.rel (0) target = $region25
    $region24: #{tpu_custom_call.1} parent=1 // pred_region
      %1058 = dma.done [#allocation4], 128
    $region25: #{tpu_custom_call.1} parent=1 // pred_fallthru
      _
    %1059 = vsyncpa [#allocation3], 1
    %1060 = vsyncpa [#allocation4], 1

</llo_original>
